<compile_context>
chip_gen: v6e
topology: v6e:2x2x1
jax: 0.10.0
libtpu: 0.0.40
codegen_flags: <defaults>
</compile_context>

<pallas_src>
import functools

import jax
import jax.numpy as jnp
from jax.experimental import pallas as pl
from jax.experimental.pallas import tpu as pltpu


# ----------------------------------------------------------------------------
# Fused Pallas kernel
# ----------------------------------------------------------------------------
def _gat_layer(x, wcat_ref, ae_ref, bias_ref, agg_ref, heads, ch):
    """One dense GAT layer (PyG GATConv semantics, concat=True), all heads batched.

    x:    [N, Fin]  f32      node features (VMEM value)
    wcat: [Fin, H*C + 2*H]   bf16: [ lin weight | W@att_src fold | W@att_dst fold ]
    ae:   [H, N, N] bf16     per-head edge-attention logit, adjacency mask folded
                             in (-1e30 on non-edges)
    bias: [1, H*C]  f32
    agg:  [N, H*C]  f32 VMEM scratch (per-head results stored at lane offsets)
    returns [N, H*C] f32
    """
    hc = heads * ch
    # one wide bf16 MXU push (f32 accumulation): node transform + both folded
    # attention projections
    z = jnp.dot(x.astype(jnp.bfloat16), wcat_ref[...],
                preferred_element_type=jnp.float32)                     # [N, HC+2H]
    h = z[:, :hc]                                                       # [N, HC]

    # single narrow transpose for both attention projections, then row-slice
    att = z[:, hc:hc + 2 * heads].T                                     # [2H, N]
    a_src_t = att[:heads]                                               # [H, N]
    a_dst_t = att[heads:]                                               # [H, N]

    # logits[h, d, s] = alpha_dst[d] + alpha_src[s] + alpha_edge[d, s]; f32 math so
    # the -1e30 non-edge sentinel and the max-subtraction stay exact.
    logits = (a_dst_t[:, :, None] + a_src_t[:, None, :]
              + ae_ref[...].astype(jnp.float32))                        # [H, N, N]
    logits = jnp.where(logits > 0, logits, 0.2 * logits)                # leaky_relu(0.2)
    m = jnp.max(logits, axis=2, keepdims=True)
    p = jnp.exp(logits - m)
    denom = jnp.sum(p, axis=2, keepdims=True)
    # EUP reciprocal; probabilities go to the MXU in bf16
    alpha = (p * pl.reciprocal(denom, approx=True)).astype(jnp.bfloat16)  # [H, N, N]

    # per-head aggregation: bf16 MXU dots, each result stored at a static lane
    # offset of the f32 VMEM scratch (no value-level lane concatenation).
    hb = h.astype(jnp.bfloat16)
    for hh in range(heads):
        agg_ref[:, hh * ch:(hh + 1) * ch] = jnp.dot(
            alpha[hh], hb[:, hh * ch:(hh + 1) * ch],
            preferred_element_type=jnp.float32)
    return agg_ref[...] + bias_ref[...]


def _layernorm(y, gamma, beta, eps=1e-5):
    mu = jnp.mean(y, axis=-1, keepdims=True)
    var = jnp.mean(jnp.square(y - mu), axis=-1, keepdims=True)
    return (y - mu) * jax.lax.rsqrt(var + eps) * gamma + beta


def gat_net_kernel(x_ref, wcat1_ref, ae1_ref, bias1_ref, g1_ref, be1_ref,
                   wcat2_ref, ae2_ref, bias2_ref,
                   member_t_ref, wf1_ref, bf1_ref, g2_ref, be2_ref,
                   wf2_ref, bf2_ref, out_ref, agg_ref, *, heads, ch):
    x = x_ref[...]

    # conv1 -> relu -> LayerNorm
    h1 = _gat_layer(x, wcat1_ref, ae1_ref, bias1_ref, agg_ref, heads, ch)
    h1 = _layernorm(jnp.maximum(h1, 0.0), g1_ref[...], be1_ref[...])

    # conv2 -> relu  (agg scratch reused; layer-1 result already consumed as a value)
    h2 = _gat_layer(h1, wcat2_ref, ae2_ref, bias2_ref, agg_ref, heads, ch)
    h2 = jnp.maximum(h2, 0.0)

    # global_max_pool: one broadcasted select + one sublane max (member_t is [B, N])
    member_t = member_t_ref[...]
    pooled = jnp.max(
        jnp.where(member_t[:, :, None] > 0, h2[None, :, :], -1e30), axis=1)  # [B, HC]

    # fc1 -> LayerNorm -> relu -> (dropout = identity) -> fc2 -> log_softmax (f32)
    z1 = jnp.dot(pooled, wf1_ref[...],
                 preferred_element_type=jnp.float32) + bf1_ref[...]     # [B, 32]
    z1 = jnp.maximum(_layernorm(z1, g2_ref[...], be2_ref[...]), 0.0)
    # TODO(synk): dropout(p=0.4) implemented as identity (inference mode).
    logits = jnp.dot(z1, wf2_ref[...],
                     preferred_element_type=jnp.float32) + bf2_ref[...]  # [B, C]
    mx = jnp.max(logits, axis=-1, keepdims=True)
    lse = mx + jnp.log(jnp.sum(jnp.exp(logits - mx), axis=-1, keepdims=True))
    out_ref[...] = logits - lse


# ----------------------------------------------------------------------------
# pallas_call wrapper (single fused call, everything resident in VMEM)
# ----------------------------------------------------------------------------
def graph_gat_forward(x, wcat1, ae1m, bias1, g1, be1,
                      wcat2, ae2m, bias2,
                      member_t, wf1, bf1, g2, be2, wf2, bf2,
                      *, heads, ch):
    num_graphs = member_t.shape[0]
    num_classes = wf2.shape[1]
    n = x.shape[0]
    kernel = functools.partial(gat_net_kernel, heads=heads, ch=ch)
    vmem = pl.BlockSpec(memory_space=pltpu.MemorySpace.VMEM)
    return pl.pallas_call(
        kernel,
        out_shape=jax.ShapeDtypeStruct((num_graphs, num_classes), jnp.float32),
        in_specs=[vmem] * 16,
        out_specs=vmem,
        scratch_shapes=[pltpu.VMEM((n, heads * ch), jnp.float32)],
    )(x, wcat1, ae1m, bias1, g1, be1, wcat2, ae2m, bias2,
      member_t, wf1, bf1, g2, be2, wf2, bf2)


# ----------------------------------------------------------------------------
# Plain-JAX glue: densify graph (PyG self-loops w/ 'mean' fill), fold att vectors
# ----------------------------------------------------------------------------
def build_dense_graph(src, dst, edge_attr, num_nodes):
    """Dense adjacency [dst, src] and dense edge attrs [dst, src, edim], replicating
    PyG GATConv's remove_self_loops + add_self_loops(fill_value='mean')."""
    edim = edge_attr.shape[1]
    nsl = (src != dst).astype(jnp.float32)
    adj = jnp.zeros((num_nodes, num_nodes), jnp.float32).at[dst, src].add(nsl)
    dense_attr = jnp.zeros((num_nodes, num_nodes, edim), jnp.float32)
    dense_attr = dense_attr.at[dst, src].add(edge_attr * nsl[:, None])
    deg = jnp.zeros((num_nodes,), jnp.float32).at[dst].add(nsl)
    attr_sum = jnp.zeros((num_nodes, edim), jnp.float32).at[dst].add(edge_attr * nsl[:, None])
    loop_attr = jnp.where(deg[:, None] > 0,
                          attr_sum / jnp.maximum(deg, 1.0)[:, None], 0.0)
    idx = jnp.arange(num_nodes)
    adj = adj.at[idx, idx].set(1.0)
    dense_attr = dense_attr.at[idx, idx].set(loop_attr)
    return adj, dense_attr


def fold_att(w, att):
    """u[f, h] = sum_c W[f, h*C+c] * att[h, c]  (so x @ u == ((x@W).reshape * att).sum(-1))."""
    heads, c = att.shape
    return jnp.einsum('fhc,hc->fh', w.reshape(w.shape[0], heads, c), att)


def edge_alpha_dense(dense_attr, w_edge, att_edge):
    """Dense per-head edge attention term, shape [H, dst, src]."""
    heads, c = att_edge.shape
    v = jnp.einsum('ehc,hc->eh', w_edge.reshape(w_edge.shape[0], heads, c), att_edge)
    return jnp.einsum('dse,eh->hds', dense_attr, v)


# ----------------------------------------------------------------------------
# main
# ----------------------------------------------------------------------------
if __name__ == "__main__":
    N_PER_GRAPH, NUM_GRAPHS = 12, 2
    N = N_PER_GRAPH * NUM_GRAPHS
    FIN, EDIM, HEADS, CH, NUM_CLASSES = 8, 6, 4, 16, 2
    HC = HEADS * CH  # 64

    key = jax.random.PRNGKey(0)
    keys = jax.random.split(key, 20)

    # --- synthetic graph (unique edges, no self loops): ring + chords per graph ---
    edges = []
    for g in range(NUM_GRAPHS):
        o = g * N_PER_GRAPH
        for i in range(N_PER_GRAPH):
            edges.append((o + i, o + (i + 1) % N_PER_GRAPH))
            edges.append((o + (i + 1) % N_PER_GRAPH, o + i))
            edges.append((o + i, o + (i + 3) % N_PER_GRAPH))
    src = jnp.array([e[0] for e in edges], dtype=jnp.int32)
    dst = jnp.array([e[1] for e in edges], dtype=jnp.int32)
    E = len(edges)

    x = jax.random.normal(keys[0], (N, FIN), jnp.float32)
    edge_attr = jax.random.normal(keys[1], (E, EDIM), jnp.float32)
    batch = jnp.repeat(jnp.arange(NUM_GRAPHS), N_PER_GRAPH)            # [N]
    member = jax.nn.one_hot(batch, NUM_GRAPHS, dtype=jnp.float32)      # [N, B]
    member_t = member.T                                                # [B, N]

    def init(k, shape, scale=0.1):
        return scale * jax.random.normal(k, shape, jnp.float32)

    # conv1 params
    W1 = init(keys[2], (FIN, HC)); atts1 = init(keys[3], (HEADS, CH))
    attd1 = init(keys[4], (HEADS, CH)); We1 = init(keys[5], (EDIM, HC))
    atte1 = init(keys[6], (HEADS, CH)); bias1 = init(keys[7], (HC,))
    # conv2 params
    W2 = init(keys[8], (HC, HC)); atts2 = init(keys[9], (HEADS, CH))
    attd2 = init(keys[10], (HEADS, CH)); We2 = init(keys[11], (EDIM, HC))
    atte2 = init(keys[12], (HEADS, CH)); bias2 = init(keys[13], (HC,))
    # norms / fcs
    g1 = 1.0 + init(keys[14], (HC,), 0.05); be1 = init(keys[15], (HC,), 0.05)
    Wf1 = init(keys[16], (HC, 32)); bf1 = init(keys[17], (32,))
    g2 = 1.0 + 0.05 * jnp.ones((32,)); be2 = 0.02 * jnp.ones((32,))
    Wf2 = init(keys[18], (32, NUM_CLASSES)); bf2 = init(keys[19], (NUM_CLASSES,))

    # glue: densify graph, fold attention vectors, pre-mask edge attention.
    # Wcat (MXU weights) and the O(N^2) ae tensors are passed in bf16.
    adj, dense_attr = build_dense_graph(src, dst, edge_attr, N)
    ae1 = edge_alpha_dense(dense_attr, We1, atte1)
    ae2 = edge_alpha_dense(dense_attr, We2, atte2)
    ae1_m = jnp.where(adj[None] > 0, ae1, -1e30).astype(jnp.bfloat16)
    ae2_m = jnp.where(adj[None] > 0, ae2, -1e30).astype(jnp.bfloat16)
    Wcat1 = jnp.concatenate(
        [W1, fold_att(W1, atts1), fold_att(W1, attd1)], axis=1).astype(jnp.bfloat16)
    Wcat2 = jnp.concatenate(
        [W2, fold_att(W2, atts2), fold_att(W2, attd2)], axis=1).astype(jnp.bfloat16)

    # ---------------- single fused kernel call ----------------
    out = graph_gat_forward(
        x, Wcat1, ae1_m, bias1.reshape(1, -1), g1.reshape(1, -1), be1.reshape(1, -1),
        Wcat2, ae2_m, bias2.reshape(1, -1),
        member_t, Wf1, bf1.reshape(1, -1), g2.reshape(1, -1), be2.reshape(1, -1),
        Wf2, bf2.reshape(1, -1), heads=HEADS, ch=CH)
    out = jax.block_until_ready(out)

    # ---------------- pure-JAX f32 reference (module semantics) ----------------
    def gat_ref(xx, W, ats, atd, ae, bias):
        hh = xx @ W
        h3 = hh.reshape(N, HEADS, CH)
        asrc = jnp.einsum('nhc,hc->nh', h3, ats)
        adst = jnp.einsum('nhc,hc->nh', h3, atd)
        logits = adst[:, None, :] + asrc[None, :, :] + jnp.transpose(ae, (1, 2, 0))
        logits = jnp.where(logits > 0, logits, 0.2 * logits)
        logits = jnp.where(adj[:, :, None] > 0, logits, -1e30)
        m = logits.max(axis=1, keepdims=True)
        p = jnp.exp(logits - m) * adj[:, :, None]
        alpha = p / p.sum(axis=1, keepdims=True)
        return jnp.einsum('dsh,shc->dhc', alpha, h3).reshape(N, HC) + bias

    def ln(v, g, b):
        mu = v.mean(-1, keepdims=True)
        var = ((v - mu) ** 2).mean(-1, keepdims=True)
        return (v - mu) * jax.lax.rsqrt(var + 1e-5) * g + b

    r = jax.nn.relu(gat_ref(x, W1, atts1, attd1, ae1, bias1))
    r = ln(r, g1, be1)
    r = jax.nn.relu(gat_ref(r, W2, atts2, attd2, ae2, bias2))
    pooled = jnp.max(jnp.where(member.T[:, :, None] > 0, r[None], -1e30), axis=1)
    z = pooled @ Wf1 + bf1
    z = jax.nn.relu(ln(z, g2, be2))
    z = z @ Wf2 + bf2
    ref = jax.nn.log_softmax(z, axis=1)

    # bf16 MXU operands + approximate EUP reciprocal bound the drift vs. the exact
    # f32 reference to ~1e-2; use a bf16-appropriate tolerance.
    if not bool(jnp.all(jnp.isfinite(out))):
        raise AssertionError("non-finite output")
    if not bool(jnp.allclose(jnp.sum(jnp.exp(out), axis=1), 1.0, atol=1e-3)):
        raise AssertionError("log_softmax rows do not normalize to 1")
    if not bool(jnp.allclose(out, ref, atol=5e-2, rtol=5e-2)):
        raise AssertionError("Pallas GAT output mismatch vs JAX reference")

    print("KERNEL_OK")
</pallas_src>

<mosaic_0001>
module attributes {stable_mosaic.version = 11 : i64} {
  func.func @gat_net_kernel(%arg0: memref<24x8xf32, #tpu.memory_space<vmem>>, %arg1: memref<8x72xbf16, #tpu.memory_space<vmem>>, %arg2: memref<4x24x24xbf16, #tpu.memory_space<vmem>>, %arg3: memref<1x64xf32, #tpu.memory_space<vmem>>, %arg4: memref<1x64xf32, #tpu.memory_space<vmem>>, %arg5: memref<1x64xf32, #tpu.memory_space<vmem>>, %arg6: memref<64x72xbf16, #tpu.memory_space<vmem>>, %arg7: memref<4x24x24xbf16, #tpu.memory_space<vmem>>, %arg8: memref<1x64xf32, #tpu.memory_space<vmem>>, %arg9: memref<2x24xf32, #tpu.memory_space<vmem>>, %arg10: memref<64x32xf32, #tpu.memory_space<vmem>>, %arg11: memref<1x32xf32, #tpu.memory_space<vmem>>, %arg12: memref<1x32xf32, #tpu.memory_space<vmem>>, %arg13: memref<1x32xf32, #tpu.memory_space<vmem>>, %arg14: memref<32x2xf32, #tpu.memory_space<vmem>>, %arg15: memref<1x2xf32, #tpu.memory_space<vmem>>, %arg16: memref<2x2xf32, #tpu.memory_space<vmem>>, %arg17: memref<24x64xf32, #tpu.memory_space<vmem>>) attributes {dimension_semantics = [], scalar_prefetch = 0 : i64, scratch_operands = 1 : i64, tpu.core_type = #tpu.core_type<tc>} {
    %c0 = arith.constant 0 : index
    %c0_0 = arith.constant 0 : index
    %0 = vector.load %arg0[%c0, %c0_0] : memref<24x8xf32, #tpu.memory_space<vmem>>, vector<24x8xf32>
    %1 = arith.truncf %0 : vector<24x8xf32> to vector<24x8xbf16>
    %c0_1 = arith.constant 0 : index
    %c0_2 = arith.constant 0 : index
    %2 = vector.load %arg1[%c0_1, %c0_2] : memref<8x72xbf16, #tpu.memory_space<vmem>>, vector<8x72xbf16>
    %cst = arith.constant dense<0.000000e+00> : vector<24x72xf32>
    %3 = tpu.matmul %1, %2, %cst {dimension_numbers = #tpu.dot_dimension_numbers<[1], [0], [0], [1], [0, 0, 1, 1], [], []>} : vector<24x8xbf16>, vector<8x72xbf16>, vector<24x72xf32> -> vector<24x72xf32>
    %4 = vector.extract_strided_slice %3 {offsets = [0, 0], sizes = [24, 64], strides = [1, 1]} : vector<24x72xf32> to vector<24x64xf32>
    %5 = vector.extract_strided_slice %3 {offsets = [0, 64], sizes = [24, 8], strides = [1, 1]} : vector<24x72xf32> to vector<24x8xf32>
    %6 = tpu.transpose %5, [1, 0] : vector<24x8xf32> -> vector<8x24xf32>
    %7 = vector.extract_strided_slice %6 {offsets = [0, 0], sizes = [4, 24], strides = [1, 1]} : vector<8x24xf32> to vector<4x24xf32>
    %8 = vector.extract_strided_slice %6 {offsets = [4, 0], sizes = [4, 24], strides = [1, 1]} : vector<8x24xf32> to vector<4x24xf32>
    %9 = vector.shape_cast %8 : vector<4x24xf32> to vector<4x24x1xf32>
    %10 = vector.shape_cast %7 : vector<4x24xf32> to vector<4x1x24xf32>
    %11 = vector.broadcast %9 : vector<4x24x1xf32> to vector<4x24x24xf32>
    %12 = vector.broadcast %10 : vector<4x1x24xf32> to vector<4x24x24xf32>
    %13 = arith.addf %11, %12 : vector<4x24x24xf32>
    %c0_3 = arith.constant 0 : index
    %c0_4 = arith.constant 0 : index
    %c0_5 = arith.constant 0 : index
    %14 = vector.load %arg2[%c0_3, %c0_4, %c0_5] : memref<4x24x24xbf16, #tpu.memory_space<vmem>>, vector<4x24x24xbf16>
    %15 = arith.extf %14 : vector<4x24x24xbf16> to vector<4x24x24xf32>
    %16 = arith.addf %13, %15 : vector<4x24x24xf32>
    %cst_6 = arith.constant 0.000000e+00 : f32
    %17 = vector.broadcast %cst_6 : f32 to vector<4x24x24xf32>
    %18 = arith.cmpf ogt, %16, %17 : vector<4x24x24xf32>
    %cst_7 = arith.constant 2.000000e-01 : f32
    %19 = vector.broadcast %cst_7 : f32 to vector<4x24x24xf32>
    %20 = arith.mulf %19, %16 : vector<4x24x24xf32>
    %21 = arith.select %18, %16, %20 : vector<4x24x24xi1>, vector<4x24x24xf32>
    %cst_8 = arith.constant dense<0xFF800000> : vector<4x24xf32>
    %22 = vector.multi_reduction <maximumf>, %21, %cst_8 [2] : vector<4x24x24xf32> to vector<4x24xf32>
    %23 = vector.shape_cast %22 : vector<4x24xf32> to vector<4x24x1xf32>
    %24 = vector.broadcast %23 : vector<4x24x1xf32> to vector<4x24x24xf32>
    %25 = arith.subf %21, %24 : vector<4x24x24xf32>
    %26 = math.exp %25 : vector<4x24x24xf32>
    %cst_9 = arith.constant dense<0.000000e+00> : vector<4x24xf32>
    %27 = vector.multi_reduction <add>, %26, %cst_9 [2] : vector<4x24x24xf32> to vector<4x24xf32>
    %28 = vector.shape_cast %27 : vector<4x24xf32> to vector<4x24x1xf32>
    %29 = tpu.reciprocal %28 {approx = true} : vector<4x24x1xf32> -> vector<4x24x1xf32>
    %30 = vector.broadcast %29 : vector<4x24x1xf32> to vector<4x24x24xf32>
    %31 = arith.mulf %26, %30 : vector<4x24x24xf32>
    %32 = arith.truncf %31 : vector<4x24x24xf32> to vector<4x24x24xbf16>
    %33 = arith.truncf %4 : vector<24x64xf32> to vector<24x64xbf16>
    %34 = vector.extract_strided_slice %32 {offsets = [0, 0, 0], sizes = [1, 24, 24], strides = [1, 1, 1]} : vector<4x24x24xbf16> to vector<1x24x24xbf16>
    %35 = vector.shape_cast %34 : vector<1x24x24xbf16> to vector<24x24xbf16>
    %36 = vector.extract_strided_slice %33 {offsets = [0, 0], sizes = [24, 16], strides = [1, 1]} : vector<24x64xbf16> to vector<24x16xbf16>
    %cst_10 = arith.constant dense<0.000000e+00> : vector<24x16xf32>
    %37 = tpu.matmul %35, %36, %cst_10 {dimension_numbers = #tpu.dot_dimension_numbers<[1], [0], [0], [1], [0, 0, 1, 1], [], []>} : vector<24x24xbf16>, vector<24x16xbf16>, vector<24x16xf32> -> vector<24x16xf32>
    %c0_11 = arith.constant 0 : index
    %c0_12 = arith.constant 0 : index
    %38 = vector.load %arg17[%c0_11, %c0_12] : memref<24x64xf32, #tpu.memory_space<vmem>>, vector<24x16xf32>
    tpu.vector_store %arg17[%c0_11, %c0_12], %37 {strides = array<i32>} : memref<24x64xf32, #tpu.memory_space<vmem>>, vector<24x16xf32>,
    %39 = vector.extract_strided_slice %32 {offsets = [1, 0, 0], sizes = [1, 24, 24], strides = [1, 1, 1]} : vector<4x24x24xbf16> to vector<1x24x24xbf16>
    %40 = vector.shape_cast %39 : vector<1x24x24xbf16> to vector<24x24xbf16>
    %41 = vector.extract_strided_slice %33 {offsets = [0, 16], sizes = [24, 16], strides = [1, 1]} : vector<24x64xbf16> to vector<24x16xbf16>
    %cst_13 = arith.constant dense<0.000000e+00> : vector<24x16xf32>
    %42 = tpu.matmul %40, %41, %cst_13 {dimension_numbers = #tpu.dot_dimension_numbers<[1], [0], [0], [1], [0, 0, 1, 1], [], []>} : vector<24x24xbf16>, vector<24x16xbf16>, vector<24x16xf32> -> vector<24x16xf32>
    %c0_14 = arith.constant 0 : index
    %c16 = arith.constant 16 : index
    %43 = vector.load %arg17[%c0_14, %c16] : memref<24x64xf32, #tpu.memory_space<vmem>>, vector<24x16xf32>
    tpu.vector_store %arg17[%c0_14, %c16], %42 {strides = array<i32>} : memref<24x64xf32, #tpu.memory_space<vmem>>, vector<24x16xf32>,
    %44 = vector.extract_strided_slice %32 {offsets = [2, 0, 0], sizes = [1, 24, 24], strides = [1, 1, 1]} : vector<4x24x24xbf16> to vector<1x24x24xbf16>
    %45 = vector.shape_cast %44 : vector<1x24x24xbf16> to vector<24x24xbf16>
    %46 = vector.extract_strided_slice %33 {offsets = [0, 32], sizes = [24, 16], strides = [1, 1]} : vector<24x64xbf16> to vector<24x16xbf16>
    %cst_15 = arith.constant dense<0.000000e+00> : vector<24x16xf32>
    %47 = tpu.matmul %45, %46, %cst_15 {dimension_numbers = #tpu.dot_dimension_numbers<[1], [0], [0], [1], [0, 0, 1, 1], [], []>} : vector<24x24xbf16>, vector<24x16xbf16>, vector<24x16xf32> -> vector<24x16xf32>
    %c0_16 = arith.constant 0 : index
    %c32 = arith.constant 32 : index
    %48 = vector.load %arg17[%c0_16, %c32] : memref<24x64xf32, #tpu.memory_space<vmem>>, vector<24x16xf32>
    tpu.vector_store %arg17[%c0_16, %c32], %47 {strides = array<i32>} : memref<24x64xf32, #tpu.memory_space<vmem>>, vector<24x16xf32>,
    %49 = vector.extract_strided_slice %32 {offsets = [3, 0, 0], sizes = [1, 24, 24], strides = [1, 1, 1]} : vector<4x24x24xbf16> to vector<1x24x24xbf16>
    %50 = vector.shape_cast %49 : vector<1x24x24xbf16> to vector<24x24xbf16>
    %51 = vector.extract_strided_slice %33 {offsets = [0, 48], sizes = [24, 16], strides = [1, 1]} : vector<24x64xbf16> to vector<24x16xbf16>
    %cst_17 = arith.constant dense<0.000000e+00> : vector<24x16xf32>
    %52 = tpu.matmul %50, %51, %cst_17 {dimension_numbers = #tpu.dot_dimension_numbers<[1], [0], [0], [1], [0, 0, 1, 1], [], []>} : vector<24x24xbf16>, vector<24x16xbf16>, vector<24x16xf32> -> vector<24x16xf32>
    %c0_18 = arith.constant 0 : index
    %c48 = arith.constant 48 : index
    %53 = vector.load %arg17[%c0_18, %c48] : memref<24x64xf32, #tpu.memory_space<vmem>>, vector<24x16xf32>
    tpu.vector_store %arg17[%c0_18, %c48], %52 {strides = array<i32>} : memref<24x64xf32, #tpu.memory_space<vmem>>, vector<24x16xf32>,
    %c0_19 = arith.constant 0 : index
    %c0_20 = arith.constant 0 : index
    %54 = vector.load %arg17[%c0_19, %c0_20] : memref<24x64xf32, #tpu.memory_space<vmem>>, vector<24x64xf32>
    %c0_21 = arith.constant 0 : index
    %c0_22 = arith.constant 0 : index
    %55 = vector.load %arg3[%c0_21, %c0_22] : memref<1x64xf32, #tpu.memory_space<vmem>>, vector<1x64xf32>
    %56 = vector.broadcast %55 : vector<1x64xf32> to vector<24x64xf32>
    %57 = arith.addf %54, %56 : vector<24x64xf32>
    %cst_23 = arith.constant 0.000000e+00 : f32
    %58 = vector.broadcast %cst_23 : f32 to vector<24x64xf32>
    %59 = arith.maximumf %57, %58 : vector<24x64xf32>
    %c0_24 = arith.constant 0 : index
    %c0_25 = arith.constant 0 : index
    %60 = vector.load %arg4[%c0_24, %c0_25] : memref<1x64xf32, #tpu.memory_space<vmem>>, vector<1x64xf32>
    %c0_26 = arith.constant 0 : index
    %c0_27 = arith.constant 0 : index
    %61 = vector.load %arg5[%c0_26, %c0_27] : memref<1x64xf32, #tpu.memory_space<vmem>>, vector<1x64xf32>
    %cst_28 = arith.constant dense<0.000000e+00> : vector<24xf32>
    %62 = vector.multi_reduction <add>, %59, %cst_28 [1] : vector<24x64xf32> to vector<24xf32>
    %63 = vector.shape_cast %62 : vector<24xf32> to vector<24x1xf32>
    %cst_29 = arith.constant 6.400000e+01 : f32
    %64 = vector.broadcast %cst_29 : f32 to vector<24x1xf32>
    %65 = arith.divf %63, %64 : vector<24x1xf32>
    %66 = vector.broadcast %65 : vector<24x1xf32> to vector<24x64xf32>
    %67 = arith.subf %59, %66 : vector<24x64xf32>
    %68 = arith.mulf %67, %67 : vector<24x64xf32>
    %cst_30 = arith.constant dense<0.000000e+00> : vector<24xf32>
    %69 = vector.multi_reduction <add>, %68, %cst_30 [1] : vector<24x64xf32> to vector<24xf32>
    %70 = vector.shape_cast %69 : vector<24xf32> to vector<24x1xf32>
    %cst_31 = arith.constant 6.400000e+01 : f32
    %71 = vector.broadcast %cst_31 : f32 to vector<24x1xf32>
    %72 = arith.divf %70, %71 : vector<24x1xf32>
    %73 = vector.broadcast %65 : vector<24x1xf32> to vector<24x64xf32>
    %74 = arith.subf %59, %73 : vector<24x64xf32>
    %cst_32 = arith.constant 9.99999974E-6 : f32
    %75 = vector.broadcast %cst_32 : f32 to vector<24x1xf32>
    %76 = arith.addf %72, %75 : vector<24x1xf32>
    %77 = math.rsqrt %76 : vector<24x1xf32>
    %78 = vector.broadcast %77 : vector<24x1xf32> to vector<24x64xf32>
    %79 = arith.mulf %74, %78 : vector<24x64xf32>
    %80 = vector.broadcast %60 : vector<1x64xf32> to vector<24x64xf32>
    %81 = arith.mulf %79, %80 : vector<24x64xf32>
    %82 = vector.broadcast %61 : vector<1x64xf32> to vector<24x64xf32>
    %83 = arith.addf %81, %82 : vector<24x64xf32>
    %84 = arith.truncf %83 : vector<24x64xf32> to vector<24x64xbf16>
    %c0_33 = arith.constant 0 : index
    %c0_34 = arith.constant 0 : index
    %85 = vector.load %arg6[%c0_33, %c0_34] : memref<64x72xbf16, #tpu.memory_space<vmem>>, vector<64x72xbf16>
    %cst_35 = arith.constant dense<0.000000e+00> : vector<24x72xf32>
    %86 = tpu.matmul %84, %85, %cst_35 {dimension_numbers = #tpu.dot_dimension_numbers<[1], [0], [0], [1], [0, 0, 1, 1], [], []>} : vector<24x64xbf16>, vector<64x72xbf16>, vector<24x72xf32> -> vector<24x72xf32>
    %87 = vector.extract_strided_slice %86 {offsets = [0, 0], sizes = [24, 64], strides = [1, 1]} : vector<24x72xf32> to vector<24x64xf32>
    %88 = vector.extract_strided_slice %86 {offsets = [0, 64], sizes = [24, 8], strides = [1, 1]} : vector<24x72xf32> to vector<24x8xf32>
    %89 = tpu.transpose %88, [1, 0] : vector<24x8xf32> -> vector<8x24xf32>
    %90 = vector.extract_strided_slice %89 {offsets = [0, 0], sizes = [4, 24], strides = [1, 1]} : vector<8x24xf32> to vector<4x24xf32>
    %91 = vector.extract_strided_slice %89 {offsets = [4, 0], sizes = [4, 24], strides = [1, 1]} : vector<8x24xf32> to vector<4x24xf32>
    %92 = vector.shape_cast %91 : vector<4x24xf32> to vector<4x24x1xf32>
    %93 = vector.shape_cast %90 : vector<4x24xf32> to vector<4x1x24xf32>
    %94 = vector.broadcast %92 : vector<4x24x1xf32> to vector<4x24x24xf32>
    %95 = vector.broadcast %93 : vector<4x1x24xf32> to vector<4x24x24xf32>
    %96 = arith.addf %94, %95 : vector<4x24x24xf32>
    %c0_36 = arith.constant 0 : index
    %c0_37 = arith.constant 0 : index
    %c0_38 = arith.constant 0 : index
    %97 = vector.load %arg7[%c0_36, %c0_37, %c0_38] : memref<4x24x24xbf16, #tpu.memory_space<vmem>>, vector<4x24x24xbf16>
    %98 = arith.extf %97 : vector<4x24x24xbf16> to vector<4x24x24xf32>
    %99 = arith.addf %96, %98 : vector<4x24x24xf32>
    %cst_39 = arith.constant 0.000000e+00 : f32
    %100 = vector.broadcast %cst_39 : f32 to vector<4x24x24xf32>
    %101 = arith.cmpf ogt, %99, %100 : vector<4x24x24xf32>
    %cst_40 = arith.constant 2.000000e-01 : f32
    %102 = vector.broadcast %cst_40 : f32 to vector<4x24x24xf32>
    %103 = arith.mulf %102, %99 : vector<4x24x24xf32>
    %104 = arith.select %101, %99, %103 : vector<4x24x24xi1>, vector<4x24x24xf32>
    %cst_41 = arith.constant dense<0xFF800000> : vector<4x24xf32>
    %105 = vector.multi_reduction <maximumf>, %104, %cst_41 [2] : vector<4x24x24xf32> to vector<4x24xf32>
    %106 = vector.shape_cast %105 : vector<4x24xf32> to vector<4x24x1xf32>
    %107 = vector.broadcast %106 : vector<4x24x1xf32> to vector<4x24x24xf32>
    %108 = arith.subf %104, %107 : vector<4x24x24xf32>
    %109 = math.exp %108 : vector<4x24x24xf32>
    %cst_42 = arith.constant dense<0.000000e+00> : vector<4x24xf32>
    %110 = vector.multi_reduction <add>, %109, %cst_42 [2] : vector<4x24x24xf32> to vector<4x24xf32>
    %111 = vector.shape_cast %110 : vector<4x24xf32> to vector<4x24x1xf32>
    %112 = tpu.reciprocal %111 {approx = true} : vector<4x24x1xf32> -> vector<4x24x1xf32>
    %113 = vector.broadcast %112 : vector<4x24x1xf32> to vector<4x24x24xf32>
    %114 = arith.mulf %109, %113 : vector<4x24x24xf32>
    %115 = arith.truncf %114 : vector<4x24x24xf32> to vector<4x24x24xbf16>
    %116 = arith.truncf %87 : vector<24x64xf32> to vector<24x64xbf16>
    %117 = vector.extract_strided_slice %115 {offsets = [0, 0, 0], sizes = [1, 24, 24], strides = [1, 1, 1]} : vector<4x24x24xbf16> to vector<1x24x24xbf16>
    %118 = vector.shape_cast %117 : vector<1x24x24xbf16> to vector<24x24xbf16>
    %119 = vector.extract_strided_slice %116 {offsets = [0, 0], sizes = [24, 16], strides = [1, 1]} : vector<24x64xbf16> to vector<24x16xbf16>
    %cst_43 = arith.constant dense<0.000000e+00> : vector<24x16xf32>
    %120 = tpu.matmul %118, %119, %cst_43 {dimension_numbers = #tpu.dot_dimension_numbers<[1], [0], [0], [1], [0, 0, 1, 1], [], []>} : vector<24x24xbf16>, vector<24x16xbf16>, vector<24x16xf32> -> vector<24x16xf32>
    %c0_44 = arith.constant 0 : index
    %c0_45 = arith.constant 0 : index
    %121 = vector.load %arg17[%c0_44, %c0_45] : memref<24x64xf32, #tpu.memory_space<vmem>>, vector<24x16xf32>
    tpu.vector_store %arg17[%c0_44, %c0_45], %120 {strides = array<i32>} : memref<24x64xf32, #tpu.memory_space<vmem>>, vector<24x16xf32>,
    %122 = vector.extract_strided_slice %115 {offsets = [1, 0, 0], sizes = [1, 24, 24], strides = [1, 1, 1]} : vector<4x24x24xbf16> to vector<1x24x24xbf16>
    %123 = vector.shape_cast %122 : vector<1x24x24xbf16> to vector<24x24xbf16>
    %124 = vector.extract_strided_slice %116 {offsets = [0, 16], sizes = [24, 16], strides = [1, 1]} : vector<24x64xbf16> to vector<24x16xbf16>
    %cst_46 = arith.constant dense<0.000000e+00> : vector<24x16xf32>
    %125 = tpu.matmul %123, %124, %cst_46 {dimension_numbers = #tpu.dot_dimension_numbers<[1], [0], [0], [1], [0, 0, 1, 1], [], []>} : vector<24x24xbf16>, vector<24x16xbf16>, vector<24x16xf32> -> vector<24x16xf32>
    %c0_47 = arith.constant 0 : index
    %c16_48 = arith.constant 16 : index
    %126 = vector.load %arg17[%c0_47, %c16_48] : memref<24x64xf32, #tpu.memory_space<vmem>>, vector<24x16xf32>
    tpu.vector_store %arg17[%c0_47, %c16_48], %125 {strides = array<i32>} : memref<24x64xf32, #tpu.memory_space<vmem>>, vector<24x16xf32>,
    %127 = vector.extract_strided_slice %115 {offsets = [2, 0, 0], sizes = [1, 24, 24], strides = [1, 1, 1]} : vector<4x24x24xbf16> to vector<1x24x24xbf16>
    %128 = vector.shape_cast %127 : vector<1x24x24xbf16> to vector<24x24xbf16>
    %129 = vector.extract_strided_slice %116 {offsets = [0, 32], sizes = [24, 16], strides = [1, 1]} : vector<24x64xbf16> to vector<24x16xbf16>
    %cst_49 = arith.constant dense<0.000000e+00> : vector<24x16xf32>
    %130 = tpu.matmul %128, %129, %cst_49 {dimension_numbers = #tpu.dot_dimension_numbers<[1], [0], [0], [1], [0, 0, 1, 1], [], []>} : vector<24x24xbf16>, vector<24x16xbf16>, vector<24x16xf32> -> vector<24x16xf32>
    %c0_50 = arith.constant 0 : index
    %c32_51 = arith.constant 32 : index
    %131 = vector.load %arg17[%c0_50, %c32_51] : memref<24x64xf32, #tpu.memory_space<vmem>>, vector<24x16xf32>
    tpu.vector_store %arg17[%c0_50, %c32_51], %130 {strides = array<i32>} : memref<24x64xf32, #tpu.memory_space<vmem>>, vector<24x16xf32>,
    %132 = vector.extract_strided_slice %115 {offsets = [3, 0, 0], sizes = [1, 24, 24], strides = [1, 1, 1]} : vector<4x24x24xbf16> to vector<1x24x24xbf16>
    %133 = vector.shape_cast %132 : vector<1x24x24xbf16> to vector<24x24xbf16>
    %134 = vector.extract_strided_slice %116 {offsets = [0, 48], sizes = [24, 16], strides = [1, 1]} : vector<24x64xbf16> to vector<24x16xbf16>
    %cst_52 = arith.constant dense<0.000000e+00> : vector<24x16xf32>
    %135 = tpu.matmul %133, %134, %cst_52 {dimension_numbers = #tpu.dot_dimension_numbers<[1], [0], [0], [1], [0, 0, 1, 1], [], []>} : vector<24x24xbf16>, vector<24x16xbf16>, vector<24x16xf32> -> vector<24x16xf32>
    %c0_53 = arith.constant 0 : index
    %c48_54 = arith.constant 48 : index
    %136 = vector.load %arg17[%c0_53, %c48_54] : memref<24x64xf32, #tpu.memory_space<vmem>>, vector<24x16xf32>
    tpu.vector_store %arg17[%c0_53, %c48_54], %135 {strides = array<i32>} : memref<24x64xf32, #tpu.memory_space<vmem>>, vector<24x16xf32>,
    %c0_55 = arith.constant 0 : index
    %c0_56 = arith.constant 0 : index
    %137 = vector.load %arg17[%c0_55, %c0_56] : memref<24x64xf32, #tpu.memory_space<vmem>>, vector<24x64xf32>
    %c0_57 = arith.constant 0 : index
    %c0_58 = arith.constant 0 : index
    %138 = vector.load %arg8[%c0_57, %c0_58] : memref<1x64xf32, #tpu.memory_space<vmem>>, vector<1x64xf32>
    %139 = vector.broadcast %138 : vector<1x64xf32> to vector<24x64xf32>
    %140 = arith.addf %137, %139 : vector<24x64xf32>
    %cst_59 = arith.constant 0.000000e+00 : f32
    %141 = vector.broadcast %cst_59 : f32 to vector<24x64xf32>
    %142 = arith.maximumf %140, %141 : vector<24x64xf32>
    %c0_60 = arith.constant 0 : index
    %c0_61 = arith.constant 0 : index
    %143 = vector.load %arg9[%c0_60, %c0_61] : memref<2x24xf32, #tpu.memory_space<vmem>>, vector<2x24xf32>
    %144 = vector.shape_cast %143 : vector<2x24xf32> to vector<2x24x1xf32>
    %cst_62 = arith.constant 0.000000e+00 : f32
    %145 = vector.broadcast %cst_62 : f32 to vector<2x24x1xf32>
    %146 = arith.cmpf ogt, %144, %145 : vector<2x24x1xf32>
    %147 = vector.shape_cast %142 : vector<24x64xf32> to vector<1x24x64xf32>
    %cst_63 = arith.constant -1.000000e+30 : f32
    %148 = vector.shape_cast %146 : vector<2x24x1xi1> to vector<2x24x1xi1>
    %149 = vector.broadcast %148 : vector<2x24x1xi1> to vector<2x24x64xi1>
    %150 = vector.shape_cast %147 : vector<1x24x64xf32> to vector<1x24x64xf32>
    %151 = vector.broadcast %150 : vector<1x24x64xf32> to vector<2x24x64xf32>
    %152 = vector.broadcast %cst_63 : f32 to vector<2x24x64xf32>
    %153 = arith.select %149, %151, %152 : vector<2x24x64xi1>, vector<2x24x64xf32>
    %cst_64 = arith.constant dense<0xFF800000> : vector<2x64xf32>
    %154 = vector.multi_reduction <maximumf>, %153, %cst_64 [1] : vector<2x24x64xf32> to vector<2x64xf32>
    %c0_65 = arith.constant 0 : index
    %c0_66 = arith.constant 0 : index
    %155 = vector.load %arg10[%c0_65, %c0_66] : memref<64x32xf32, #tpu.memory_space<vmem>>, vector<64x32xf32>
    %cst_67 = arith.constant dense<0.000000e+00> : vector<2x32xf32>
    %156 = tpu.matmul %154, %155, %cst_67 {dimension_numbers = #tpu.dot_dimension_numbers<[1], [0], [0], [1], [0, 0, 1, 1], [], []>} : vector<2x64xf32>, vector<64x32xf32>, vector<2x32xf32> -> vector<2x32xf32>
    %c0_68 = arith.constant 0 : index
    %c0_69 = arith.constant 0 : index
    %157 = vector.load %arg11[%c0_68, %c0_69] : memref<1x32xf32, #tpu.memory_space<vmem>>, vector<1x32xf32>
    %158 = vector.broadcast %157 : vector<1x32xf32> to vector<2x32xf32>
    %159 = arith.addf %156, %158 : vector<2x32xf32>
    %c0_70 = arith.constant 0 : index
    %c0_71 = arith.constant 0 : index
    %160 = vector.load %arg12[%c0_70, %c0_71] : memref<1x32xf32, #tpu.memory_space<vmem>>, vector<1x32xf32>
    %c0_72 = arith.constant 0 : index
    %c0_73 = arith.constant 0 : index
    %161 = vector.load %arg13[%c0_72, %c0_73] : memref<1x32xf32, #tpu.memory_space<vmem>>, vector<1x32xf32>
    %cst_74 = arith.constant dense<0.000000e+00> : vector<2xf32>
    %162 = vector.multi_reduction <add>, %159, %cst_74 [1] : vector<2x32xf32> to vector<2xf32>
    %163 = vector.shape_cast %162 : vector<2xf32> to vector<2x1xf32>
    %cst_75 = arith.constant 3.200000e+01 : f32
    %164 = vector.broadcast %cst_75 : f32 to vector<2x1xf32>
    %165 = arith.divf %163, %164 : vector<2x1xf32>
    %166 = vector.broadcast %165 : vector<2x1xf32> to vector<2x32xf32>
    %167 = arith.subf %159, %166 : vector<2x32xf32>
    %168 = arith.mulf %167, %167 : vector<2x32xf32>
    %cst_76 = arith.constant dense<0.000000e+00> : vector<2xf32>
    %169 = vector.multi_reduction <add>, %168, %cst_76 [1] : vector<2x32xf32> to vector<2xf32>
    %170 = vector.shape_cast %169 : vector<2xf32> to vector<2x1xf32>
    %cst_77 = arith.constant 3.200000e+01 : f32
    %171 = vector.broadcast %cst_77 : f32 to vector<2x1xf32>
    %172 = arith.divf %170, %171 : vector<2x1xf32>
    %173 = vector.broadcast %165 : vector<2x1xf32> to vector<2x32xf32>
    %174 = arith.subf %159, %173 : vector<2x32xf32>
    %cst_78 = arith.constant 9.99999974E-6 : f32
    %175 = vector.broadcast %cst_78 : f32 to vector<2x1xf32>
    %176 = arith.addf %172, %175 : vector<2x1xf32>
    %177 = math.rsqrt %176 : vector<2x1xf32>
    %178 = vector.broadcast %177 : vector<2x1xf32> to vector<2x32xf32>
    %179 = arith.mulf %174, %178 : vector<2x32xf32>
    %180 = vector.broadcast %160 : vector<1x32xf32> to vector<2x32xf32>
    %181 = arith.mulf %179, %180 : vector<2x32xf32>
    %182 = vector.broadcast %161 : vector<1x32xf32> to vector<2x32xf32>
    %183 = arith.addf %181, %182 : vector<2x32xf32>
    %cst_79 = arith.constant 0.000000e+00 : f32
    %184 = vector.broadcast %cst_79 : f32 to vector<2x32xf32>
    %185 = arith.maximumf %183, %184 : vector<2x32xf32>
    %c0_80 = arith.constant 0 : index
    %c0_81 = arith.constant 0 : index
    %186 = vector.load %arg14[%c0_80, %c0_81] : memref<32x2xf32, #tpu.memory_space<vmem>>, vector<32x2xf32>
    %cst_82 = arith.constant dense<0.000000e+00> : vector<2x2xf32>
    %187 = tpu.matmul %185, %186, %cst_82 {dimension_numbers = #tpu.dot_dimension_numbers<[1], [0], [0], [1], [0, 0, 1, 1], [], []>} : vector<2x32xf32>, vector<32x2xf32>, vector<2x2xf32> -> vector<2x2xf32>
    %c0_83 = arith.constant 0 : index
    %c0_84 = arith.constant 0 : index
    %188 = vector.load %arg15[%c0_83, %c0_84] : memref<1x2xf32, #tpu.memory_space<vmem>>, vector<1x2xf32>
    %189 = vector.broadcast %188 : vector<1x2xf32> to vector<2x2xf32>
    %190 = arith.addf %187, %189 : vector<2x2xf32>
    %cst_85 = arith.constant dense<0xFF800000> : vector<2xf32>
    %191 = vector.multi_reduction <maximumf>, %190, %cst_85 [1] : vector<2x2xf32> to vector<2xf32>
    %192 = vector.shape_cast %191 : vector<2xf32> to vector<2x1xf32>
    %193 = vector.broadcast %192 : vector<2x1xf32> to vector<2x2xf32>
    %194 = arith.subf %190, %193 : vector<2x2xf32>
    %195 = math.exp %194 : vector<2x2xf32>
    %cst_86 = arith.constant dense<0.000000e+00> : vector<2xf32>
    %196 = vector.multi_reduction <add>, %195, %cst_86 [1] : vector<2x2xf32> to vector<2xf32>
    %197 = vector.shape_cast %196 : vector<2xf32> to vector<2x1xf32>
    %198 = math.log %197 : vector<2x1xf32>
    %199 = arith.addf %192, %198 : vector<2x1xf32>
    %200 = vector.broadcast %199 : vector<2x1xf32> to vector<2x2xf32>
    %201 = arith.subf %190, %200 : vector<2x2xf32>
    %c0_87 = arith.constant 0 : index
    %c0_88 = arith.constant 0 : index
    %202 = vector.load %arg16[%c0_87, %c0_88] : memref<2x2xf32, #tpu.memory_space<vmem>>, vector<2x2xf32>
    tpu.vector_store %arg16[%c0_87, %c0_88], %201 {strides = array<i32>} : memref<2x2xf32, #tpu.memory_space<vmem>>, vector<2x2xf32>,
    return
  }
}

</mosaic_0001>

<llo_original>
// kernel: tpu_custom_call.1
$region0: #{tpu_custom_call.1}
  #allocation0 [shape = 'u32[]', space=smem, size = 0x4, offset = 0x4, fixed_abs, tag = 'smem constant byte address 0x4 - core index']
  #allocation1 [shape = 'u32[144,128]{1,0:T(1,128)}', space=vmem, size = 0x12000, scoped, tag = 'internal scratch']
  #allocation2 [shape = 'f32[24,64]{1,0:T(8,128)}', space=vmem, size = 0x3000, scoped, tag = 'scratch operand']
  %s0 = inlined_call_operand.vmem [shape: f32[24,8], index: 0, kind: input, shape index: {}]
  %s1 = inlined_call_operand.hbm [shape: bf16[8,72], index: 1, kind: input, shape index: {}]
  %s2 = inlined_call_operand.vmem [shape: bf16[4,24,24], index: 2, kind: input, shape index: {}]
  %s3 = inlined_call_operand.vmem [shape: f32[1,64], index: 3, kind: input, shape index: {}]
  %s4 = inlined_call_operand.vmem [shape: f32[1,64], index: 4, kind: input, shape index: {}]
  %s5 = inlined_call_operand.vmem [shape: f32[1,64], index: 5, kind: input, shape index: {}]
  %s6 = inlined_call_operand.vmem [shape: bf16[64,72], index: 6, kind: input, shape index: {}]
  %s7 = inlined_call_operand.vmem [shape: bf16[4,24,24], index: 7, kind: input, shape index: {}]
  %s8 = inlined_call_operand.vmem [shape: f32[1,64], index: 8, kind: input, shape index: {}]
  %s9 = inlined_call_operand.vmem [shape: f32[2,24], index: 9, kind: input, shape index: {}]
  %s10 = inlined_call_operand.vmem [shape: f32[64,32], index: 10, kind: input, shape index: {}]
  %s11 = inlined_call_operand.vmem [shape: f32[1,32], index: 11, kind: input, shape index: {}]
  %s12 = inlined_call_operand.vmem [shape: f32[1,32], index: 12, kind: input, shape index: {}]
  %s13 = inlined_call_operand.vmem [shape: f32[1,32], index: 13, kind: input, shape index: {}]
  %s14 = inlined_call_operand.vmem [shape: f32[32,2], index: 14, kind: input, shape index: {}]
  %s15 = inlined_call_operand.vmem [shape: f32[1,2], index: 15, kind: input, shape index: {}]
  %s16 = inlined_call_operand.hbm [shape: f32[2,2], index: 16, kind: output, shape index: {}]
  %s17 = sld [smem:[#allocation0]]
  $region78: #{tpu_custom_call.1} parent=0
    _
  %s19 = ssub.s32 1, %s17
  %s20 = scalar_select 0, %s19, %s17
  $region1: #{tpu_custom_call.1} parent=0
    #allocation3 [shape = 'u8[2048]{0}', space=vmem, size = 0x800, scoped, tag = 'input window, operand 1, single buffered']
    #allocation4 [shape = 's32[1]{0}', space=sflag, size = 0x4, scoped, tag = 'scoped memory for tpu_custom_call.1']
    #allocation5 [shape = 's32[1]{0}', space=sflag, size = 0x4, scoped, tag = 'scoped memory for tpu_custom_call.1']
    #allocation6 [shape = 'u8[1024]{0}', space=vmem, size = 0x400, scoped, tag = 'output window, operand 0, single buffered']
    %21 = vsyncpa [#allocation4], 0
    %22 = vsyncpa [#allocation5], 0
    // Predicated region
    $region2: #{tpu_custom_call.1} parent=1 // pred_check
      _
    $region3: #{tpu_custom_call.1} parent=1 // pred_check_branch
      %24 = sbr.rel (0) target = $region5
    $region4: #{tpu_custom_call.1} parent=1 // pred_region
      _
    $region5: #{tpu_custom_call.1} parent=1 // pred_fallthru
      _
    // Predicated region
    $region6: #{tpu_custom_call.1} parent=1 // pred_check
      _
    $region7: #{tpu_custom_call.1} parent=1 // pred_check_branch
      %26 = sbr.rel (0) target = $region9
    $region8: #{tpu_custom_call.1} parent=1 // pred_region
      %s28 = ssub.s32 64, 64
      %29 = vsyncadd [#allocation4], %s28
      %s31 = sshll.u32 [#allocation3], 4
      %s32 = int_to_ptr.vmem [resolvable:$true] %s31
      %34 = dma.hbm_to_vmem [thread:$0]  %s1, 64, %s32, [#allocation4]
    $region9: #{tpu_custom_call.1} parent=1 // pred_fallthru
      _
    // Predicated region
    $region10: #{tpu_custom_call.1} parent=1 // pred_check
      _
    $region11: #{tpu_custom_call.1} parent=1 // pred_check_branch
      %36 = sbr.rel (0) target = $region13
    $region12: #{tpu_custom_call.1} parent=1 // pred_region
      _
    $region13: #{tpu_custom_call.1} parent=1 // pred_fallthru
      _
    // Predicated region
    $region14: #{tpu_custom_call.1} parent=1 // pred_check
      _
    $region15: #{tpu_custom_call.1} parent=1 // pred_check_branch
      %38 = sbr.rel (0) target = $region17
    $region16: #{tpu_custom_call.1} parent=1 // pred_region
      _
    $region17: #{tpu_custom_call.1} parent=1 // pred_fallthru
      _
    // Predicated region
    $region18: #{tpu_custom_call.1} parent=1 // pred_check
      _
    $region19: #{tpu_custom_call.1} parent=1 // pred_check_branch
      %40 = sbr.rel (0) target = $region21
    $region20: #{tpu_custom_call.1} parent=1 // pred_region
      _
    $region21: #{tpu_custom_call.1} parent=1 // pred_fallthru
      _
    // Predicated region
    $region22: #{tpu_custom_call.1} parent=1 // pred_check
      _
    $region23: #{tpu_custom_call.1} parent=1 // pred_check_branch
      %42 = sbr.rel (0) target = $region25
    $region24: #{tpu_custom_call.1} parent=1 // pred_region
      _
    $region25: #{tpu_custom_call.1} parent=1 // pred_fallthru
      _
    // Predicated region
    $region26: #{tpu_custom_call.1} parent=1 // pred_check
      _
    $region27: #{tpu_custom_call.1} parent=1 // pred_check_branch
      %44 = sbr.rel (0) target = $region29
    $region28: #{tpu_custom_call.1} parent=1 // pred_region
      _
    $region29: #{tpu_custom_call.1} parent=1 // pred_fallthru
      _
    // Predicated region
    $region30: #{tpu_custom_call.1} parent=1 // pred_check
      _
    $region31: #{tpu_custom_call.1} parent=1 // pred_check_branch
      %46 = sbr.rel (0) target = $region33
    $region32: #{tpu_custom_call.1} parent=1 // pred_region
      _
    $region33: #{tpu_custom_call.1} parent=1 // pred_fallthru
      _
    // Predicated region
    $region34: #{tpu_custom_call.1} parent=1 // pred_check
      _
    $region35: #{tpu_custom_call.1} parent=1 // pred_check_branch
      %48 = sbr.rel (0) target = $region37
    $region36: #{tpu_custom_call.1} parent=1 // pred_region
      _
    $region37: #{tpu_custom_call.1} parent=1 // pred_fallthru
      _
    // Predicated region
    $region38: #{tpu_custom_call.1} parent=1 // pred_check
      _
    $region39: #{tpu_custom_call.1} parent=1 // pred_check_branch
      %50 = sbr.rel (0) target = $region41
    $region40: #{tpu_custom_call.1} parent=1 // pred_region
      _
    $region41: #{tpu_custom_call.1} parent=1 // pred_fallthru
      _
    // Predicated region
    $region42: #{tpu_custom_call.1} parent=1 // pred_check
      _
    $region43: #{tpu_custom_call.1} parent=1 // pred_check_branch
      %52 = sbr.rel (0) target = $region45
    $region44: #{tpu_custom_call.1} parent=1 // pred_region
      _
    $region45: #{tpu_custom_call.1} parent=1 // pred_fallthru
      _
    // Predicated region
    $region46: #{tpu_custom_call.1} parent=1 // pred_check
      _
    $region47: #{tpu_custom_call.1} parent=1 // pred_check_branch
      %54 = sbr.rel (0) target = $region49
    $region48: #{tpu_custom_call.1} parent=1 // pred_region
      _
    $region49: #{tpu_custom_call.1} parent=1 // pred_fallthru
      _
    // Predicated region
    $region50: #{tpu_custom_call.1} parent=1 // pred_check
      _
    $region51: #{tpu_custom_call.1} parent=1 // pred_check_branch
      %56 = sbr.rel (0) target = $region53
    $region52: #{tpu_custom_call.1} parent=1 // pred_region
      _
    $region53: #{tpu_custom_call.1} parent=1 // pred_fallthru
      _
    // Predicated region
    $region54: #{tpu_custom_call.1} parent=1 // pred_check
      _
    $region55: #{tpu_custom_call.1} parent=1 // pred_check_branch
      %58 = sbr.rel (0) target = $region57
    $region56: #{tpu_custom_call.1} parent=1 // pred_region
      _
    $region57: #{tpu_custom_call.1} parent=1 // pred_fallthru
      _
    // Predicated region
    $region58: #{tpu_custom_call.1} parent=1 // pred_check
      _
    $region59: #{tpu_custom_call.1} parent=1 // pred_check_branch
      %60 = sbr.rel (0) target = $region61
    $region60: #{tpu_custom_call.1} parent=1 // pred_region
      _
    $region61: #{tpu_custom_call.1} parent=1 // pred_fallthru
      _
    // Predicated region
    $region62: #{tpu_custom_call.1} parent=1 // pred_check
      _
    $region63: #{tpu_custom_call.1} parent=1 // pred_check_branch
      %62 = sbr.rel (0) target = $region65
    $region64: #{tpu_custom_call.1} parent=1 // pred_region
      _
    $region65: #{tpu_custom_call.1} parent=1 // pred_fallthru
      _
    // Predicated region
    $region66: #{tpu_custom_call.1} parent=1 // pred_check
      _
    $region67: #{tpu_custom_call.1} parent=1 // pred_check_branch
      %64 = sbr.rel (0) target = $region69
    $region68: #{tpu_custom_call.1} parent=1 // pred_region
      %65 = dma.done [#allocation4], 64
    $region69: #{tpu_custom_call.1} parent=1 // pred_fallthru
      _
    %v67 = vld [vmem:[%s0] sm:$0xff]
    %v68 = vld [vmem:[%s0 + $0x8] sm:$0xff]
    %v69 = vld [vmem:[%s0 + $0x10] sm:$0xff]
    %v70 = vpack.c.bf16 %v68, %v67
    %v71 = vpack.c.bf16 %v69, %v69
    %v72 = vld [vmem:[#allocation3] sm:$0xf]
    %vm73 = vcmask 64512
    %v75 = vsel %vm73, %v70, 0
    %v78 = vsel %vm73, %v71, 0
    %vm80 = vcmask 1043456
    %v82 = vsel %vm80, %v72, 0
    %84 = vmatprep.subr.bf16.mxu0 0
    %85 = vmatpush1.bf16.msra.mxu0 0
    %86 = vmatprep.subr.bf16.mxu0 0
    %87 = vmatpush1.bf16.msra.mxu0 0
    %88 = vmatprep.subr.bf16.mxu0 0
    %89 = vmatpush1.bf16.msra.mxu0 0
    %90 = vmatprep.subr.bf16.mxu0 0
    %91 = vmatpush1.bf16.msra.mxu0 0
    %92 = vmatprep.subr.bf16.mxu0 0
    %93 = vmatpush1.bf16.msra.mxu0 0
    %94 = vmatprep.subr.bf16.mxu0 0
    %95 = vmatpush1.bf16.msra.mxu0 0
    %96 = vmatprep.subr.bf16.mxu0 0
    %97 = vmatpush1.bf16.msra.mxu0 0
    %98 = vmatprep.subr.bf16.mxu0 0
    %99 = vmatpush1.bf16.msra.mxu0 %v82
    %100 = vmatprep.subr.bf16.mxu0 0
    %101 = vmatpush2.bf16.msra.mxu0 0
    %102 = vmatprep.subr.bf16.mxu0 0
    %103 = vmatpush2.bf16.msra.mxu0 0
    %104 = vmatprep.subr.bf16.mxu0 0
    %105 = vmatpush2.bf16.msra.mxu0 0
    %106 = vmatprep.subr.bf16.mxu0 0
    %107 = vmatpush2.bf16.msra.mxu0 0
    %108 = vmatprep.subr.bf16.mxu0 0
    %109 = vmatpush2.bf16.msra.mxu0 0
    %110 = vmatprep.subr.bf16.mxu0 0
    %111 = vmatpush2.bf16.msra.mxu0 0
    %112 = vmatprep.subr.bf16.mxu0 0
    %113 = vmatpush2.bf16.msra.mxu0 0
    %114 = vmatprep.subr.bf16.mxu0 0
    %115 = vmatpush2.bf16.msra.mxu0 0
    %116 = vmatprep.mubr.bf16.mxu0 0
    %117 = vmatmul.mubr.bf16.gmra.mxu0 %v75
    %v118 = vpop.f32.mrf.mxu0
    %v119 = vadd.f32 0.0, %v118
    %v120 = vpop.f32.mrf.mxu0
    %v121 = vpop.f32.mrf.mxu0
    %v122 = vadd.f32 0.0, %v121
    %v123 = vpop.f32.mrf.mxu0
    %124 = vmatprep.mubr.bf16.mxu0 0
    %125 = vmatmul.mubr.bf16.gmra.mxu0 %v78
    %v126 = vpop.f32.mrf.mxu0
    %v127 = vadd.f32 0.0, %v126
    %v128 = vpop.f32.mrf.mxu0
    %v129 = vpop.f32.mrf.mxu0
    %v130 = vpop.f32.mrf.mxu0
    %131 = vdwg.mxu0
    %135 = vrot.lane.b32.xlu0 %v119, 64
    %v136 = vpop.permute.xlu0 %135
    %137 = vrot.lane.b32.xlu0 %v122, 64
    %v138 = vpop.permute.xlu0 %137
    %139 = vrot.lane.b32.xlu0 %v127, 64
    %v140 = vpop.permute.xlu0 %139
    %144 = vxpose.xlu0.b32.start [1/16] %v136, 128
    %145 = vxpose.xlu0.b32.cont [2/16] %v138, 128
    %146 = vxpose.xlu0.b32.cont [3/16] %v140, 128
    %147 = vxpose.xlu0.b32.cont [4/16] 0.0, 128
    %148 = vxpose.xlu0.b32.cont [5/16] 0.0, 128
    %149 = vxpose.xlu0.b32.cont [6/16] 0.0, 128
    %150 = vxpose.xlu0.b32.cont [7/16] 0.0, 128
    %151 = vxpose.xlu0.b32.cont [8/16] 0.0, 128
    %152 = vxpose.xlu0.b32.cont [9/16] 0.0, 128
    %153 = vxpose.xlu0.b32.cont [10/16] 0.0, 128
    %154 = vxpose.xlu0.b32.cont [11/16] 0.0, 128
    %155 = vxpose.xlu0.b32.cont [12/16] 0.0, 128
    %156 = vxpose.xlu0.b32.cont [13/16] 0.0, 128
    %157 = vxpose.xlu0.b32.cont [14/16] 0.0, 128
    %158 = vxpose.xlu0.b32.cont [15/16] 0.0, 128
    %159 = vxpose.xlu0.b32.end [16/16] 0.0, 128
    %v160 = vpop.trf.xlu0
    %v161 = vpop.trf.xlu0
    %v162 = vpop.trf.xlu0
    %v163 = vpop.trf.xlu0
    %v164 = vpop.trf.xlu0
    %v165 = vpop.trf.xlu0
    %v166 = vpop.trf.xlu0
    %v167 = vpop.trf.xlu0
    %v168 = vpop.trf.xlu0
    %v169 = vpop.trf.xlu0
    %v170 = vpop.trf.xlu0
    %v171 = vpop.trf.xlu0
    %v172 = vpop.trf.xlu0
    %v173 = vpop.trf.xlu0
    %v174 = vpop.trf.xlu0
    %v175 = vpop.trf.xlu0
    %v176 = vlaneseq
    %v177 = vshrl.u32 %v176, 7
    %v178 = vsub.s32 4, %v177
    %v179 = vrot.slane %v160, %v178
    %181 = vbcast.lane.b32.xlu0 %v179, 256
    %v182 = vpop.permute.xlu0 %181
    %s184 = sor.u32 256, 8
    %185 = vbcast.lane.b32.xlu0 %v179, %s184
    %v186 = vpop.permute.xlu0 %185
    %s188 = sor.u32 256, 16
    %189 = vbcast.lane.b32.xlu0 %v179, %s188
    %v190 = vpop.permute.xlu0 %189
    %v191 = vlaneseq
    %v192 = vshrl.u32 %v191, 7
    %v193 = vsub.s32 5, %v192
    %v194 = vrot.slane %v160, %v193
    %196 = vbcast.lane.b32.xlu0 %v194, 256
    %v197 = vpop.permute.xlu0 %196
    %s199 = sor.u32 256, 8
    %200 = vbcast.lane.b32.xlu0 %v194, %s199
    %v201 = vpop.permute.xlu0 %200
    %s203 = sor.u32 256, 16
    %204 = vbcast.lane.b32.xlu0 %v194, %s203
    %v205 = vpop.permute.xlu0 %204
    %v206 = vlaneseq
    %v207 = vshrl.u32 %v206, 7
    %v208 = vsub.s32 6, %v207
    %v209 = vrot.slane %v160, %v208
    %211 = vbcast.lane.b32.xlu0 %v209, 256
    %v212 = vpop.permute.xlu0 %211
    %s214 = sor.u32 256, 8
    %215 = vbcast.lane.b32.xlu0 %v209, %s214
    %v216 = vpop.permute.xlu0 %215
    %s218 = sor.u32 256, 16
    %219 = vbcast.lane.b32.xlu0 %v209, %s218
    %v220 = vpop.permute.xlu0 %219
    %v221 = vlaneseq
    %v222 = vshrl.u32 %v221, 7
    %v223 = vsub.s32 7, %v222
    %v224 = vrot.slane %v160, %v223
    %226 = vbcast.lane.b32.xlu0 %v224, 256
    %v227 = vpop.permute.xlu0 %226
    %s229 = sor.u32 256, 8
    %230 = vbcast.lane.b32.xlu0 %v224, %s229
    %v231 = vpop.permute.xlu0 %230
    %s233 = sor.u32 256, 16
    %234 = vbcast.lane.b32.xlu0 %v224, %s233
    %v235 = vpop.permute.xlu0 %234
    %v238 = vunpack.c.l.s4 1966171168
    %v239 = vunpack.c.0.s8 %v238
    %v240 = vlaneseq
    %v241 = vshrl.u32 %v240, 7
    %v242 = vsub.s32 %v239, %v241
    %v243 = vrot.slane %v160, %v242
    %v244 = vcombine.high %v243, %v243
    %v246 = vunpack.c.l.s4 1966171168
    %v247 = vunpack.c.0.s8 %v246
    %v248 = vlaneseq
    %v249 = vshrl.u32 %v248, 7
    %v250 = vsub.s32 %v247, %v249
    %v251 = vrot.slane %v243, %v250
    %v253 = vunpack.c.l.s4 1966171168
    %v254 = vunpack.c.0.s8 %v253
    %v255 = vlaneseq
    %v256 = vshrl.u32 %v255, 7
    %v257 = vsub.s32 %v254, %v256
    %v258 = vrot.slane %v244, %v257
    %v259 = vcombine.high %v251, %v251
    %v260 = vcombine.high %v258, %v258
    %v261 = vlaneseq
    %v262 = vshrl.u32 %v261, 7
    %v263 = vsub.s32 0, %v262
    %v264 = vrot.slane %v251, %v263
    %v265 = vlaneseq
    %v266 = vshrl.u32 %v265, 7
    %v267 = vsub.s32 0, %v266
    %v268 = vrot.slane %v258, %v267
    %v269 = vlaneseq
    %v270 = vshrl.u32 %v269, 7
    %v271 = vsub.s32 0, %v270
    %v272 = vrot.slane %v259, %v271
    %v273 = vlaneseq
    %v274 = vshrl.u32 %v273, 7
    %v275 = vsub.s32 0, %v274
    %v276 = vrot.slane %v260, %v275
    %v281 = vadd.f32 %v182, %v264
    %v282 = vadd.f32 %v186, %v264
    %v283 = vadd.f32 %v190, %v264
    %v284 = vadd.f32 %v197, %v268
    %v285 = vadd.f32 %v201, %v268
    %v286 = vadd.f32 %v205, %v268
    %v287 = vadd.f32 %v212, %v272
    %v288 = vadd.f32 %v216, %v272
    %v289 = vadd.f32 %v220, %v272
    %v290 = vadd.f32 %v227, %v276
    %v291 = vadd.f32 %v231, %v276
    %v292 = vadd.f32 %v235, %v276
    %v293 = vld [vmem:[%s2] sm:$0xf]
    %v294 = vld [vmem:[%s2 + $0x4] sm:$0xf]
    %v295 = vld [vmem:[%s2 + $0x8] sm:$0xf]
    %v296 = vld [vmem:[%s2 + $0xc] sm:$0xf]
    %v297 = vld [vmem:[%s2 + $0x10] sm:$0xf]
    %v298 = vld [vmem:[%s2 + $0x14] sm:$0xf]
    %v299 = vld [vmem:[%s2 + $0x18] sm:$0xf]
    %v300 = vld [vmem:[%s2 + $0x1c] sm:$0xf]
    %v301 = vld [vmem:[%s2 + $0x20] sm:$0xf]
    %v302 = vld [vmem:[%s2 + $0x24] sm:$0xf]
    %v303 = vld [vmem:[%s2 + $0x28] sm:$0xf]
    %v304 = vld [vmem:[%s2 + $0x2c] sm:$0xf]
    %v305 = vunpack.c.l.bf16 %v293
    %v306 = vunpack.c.l.bf16 %v294
    %v307 = vunpack.c.l.bf16 %v295
    %v308 = vunpack.c.l.bf16 %v296
    %v309 = vunpack.c.l.bf16 %v297
    %v310 = vunpack.c.l.bf16 %v298
    %v311 = vunpack.c.l.bf16 %v299
    %v312 = vunpack.c.l.bf16 %v300
    %v313 = vunpack.c.l.bf16 %v301
    %v314 = vunpack.c.l.bf16 %v302
    %v315 = vunpack.c.l.bf16 %v303
    %v316 = vunpack.c.l.bf16 %v304
    %v317 = vadd.f32 %v281, %v305
    %v318 = vadd.f32 %v282, %v306
    %v319 = vadd.f32 %v283, %v307
    %v320 = vadd.f32 %v284, %v308
    %v321 = vadd.f32 %v285, %v309
    %v322 = vadd.f32 %v286, %v310
    %v323 = vadd.f32 %v287, %v311
    %v324 = vadd.f32 %v288, %v312
    %v325 = vadd.f32 %v289, %v313
    %v326 = vadd.f32 %v290, %v314
    %v327 = vadd.f32 %v291, %v315
    %v328 = vadd.f32 %v292, %v316
    %vm329 = vcmp.gt.f32.partialorder %v317, 0.0
    %vm330 = vcmp.gt.f32.partialorder %v318, 0.0
    %vm331 = vcmp.gt.f32.partialorder %v319, 0.0
    %vm332 = vcmp.gt.f32.partialorder %v320, 0.0
    %vm333 = vcmp.gt.f32.partialorder %v321, 0.0
    %vm334 = vcmp.gt.f32.partialorder %v322, 0.0
    %vm335 = vcmp.gt.f32.partialorder %v323, 0.0
    %vm336 = vcmp.gt.f32.partialorder %v324, 0.0
    %vm337 = vcmp.gt.f32.partialorder %v325, 0.0
    %vm338 = vcmp.gt.f32.partialorder %v326, 0.0
    %vm339 = vcmp.gt.f32.partialorder %v327, 0.0
    %vm340 = vcmp.gt.f32.partialorder %v328, 0.0
    %v341 = vmul.f32 %v317, 0.2
    %v342 = vmul.f32 %v318, 0.2
    %v343 = vmul.f32 %v319, 0.2
    %v344 = vmul.f32 %v320, 0.2
    %v345 = vmul.f32 %v321, 0.2
    %v346 = vmul.f32 %v322, 0.2
    %v347 = vmul.f32 %v323, 0.2
    %v348 = vmul.f32 %v324, 0.2
    %v349 = vmul.f32 %v325, 0.2
    %v350 = vmul.f32 %v326, 0.2
    %v351 = vmul.f32 %v327, 0.2
    %v352 = vmul.f32 %v328, 0.2
    %v353 = vsel %vm329, %v317, %v341
    %v354 = vsel %vm330, %v318, %v342
    %v355 = vsel %vm331, %v319, %v343
    %v356 = vsel %vm332, %v320, %v344
    %v357 = vsel %vm333, %v321, %v345
    %v358 = vsel %vm334, %v322, %v346
    %v359 = vsel %vm335, %v323, %v347
    %v360 = vsel %vm336, %v324, %v348
    %v361 = vsel %vm337, %v325, %v349
    %v362 = vsel %vm338, %v326, %v350
    %v363 = vsel %vm339, %v327, %v351
    %v364 = vsel %vm340, %v328, %v352
    %vm365 = vcmask 195584
    %v366 = vsel %vm365, %v353, -inf
    %367 = vmax.xlane.f32.xlu0 %v366
    %v368 = vpop.xlane.xlu0 %367
    %v369 = vsel %vm365, %v354, -inf
    %370 = vmax.xlane.f32.xlu0 %v369
    %v371 = vpop.xlane.xlu0 %370
    %v372 = vsel %vm365, %v355, -inf
    %373 = vmax.xlane.f32.xlu0 %v372
    %v374 = vpop.xlane.xlu0 %373
    %v375 = vsel %vm365, %v356, -inf
    %376 = vmax.xlane.f32.xlu0 %v375
    %v377 = vpop.xlane.xlu0 %376
    %v378 = vsel %vm365, %v357, -inf
    %379 = vmax.xlane.f32.xlu0 %v378
    %v380 = vpop.xlane.xlu0 %379
    %v381 = vsel %vm365, %v358, -inf
    %382 = vmax.xlane.f32.xlu0 %v381
    %v383 = vpop.xlane.xlu0 %382
    %v384 = vsel %vm365, %v359, -inf
    %385 = vmax.xlane.f32.xlu0 %v384
    %v386 = vpop.xlane.xlu0 %385
    %v387 = vsel %vm365, %v360, -inf
    %388 = vmax.xlane.f32.xlu0 %v387
    %v389 = vpop.xlane.xlu0 %388
    %v390 = vsel %vm365, %v361, -inf
    %391 = vmax.xlane.f32.xlu0 %v390
    %v392 = vpop.xlane.xlu0 %391
    %v393 = vsel %vm365, %v362, -inf
    %394 = vmax.xlane.f32.xlu0 %v393
    %v395 = vpop.xlane.xlu0 %394
    %v396 = vsel %vm365, %v363, -inf
    %397 = vmax.xlane.f32.xlu0 %v396
    %v398 = vpop.xlane.xlu0 %397
    %v399 = vsel %vm365, %v364, -inf
    %400 = vmax.xlane.f32.xlu0 %v399
    %v401 = vpop.xlane.xlu0 %400
    %v402 = vsub.f32 %v353, %v368
    %v403 = vsub.f32 %v354, %v371
    %v404 = vsub.f32 %v355, %v374
    %v405 = vsub.f32 %v356, %v377
    %v406 = vsub.f32 %v357, %v380
    %v407 = vsub.f32 %v358, %v383
    %v408 = vsub.f32 %v359, %v386
    %v409 = vsub.f32 %v360, %v389
    %v410 = vsub.f32 %v361, %v392
    %v411 = vsub.f32 %v362, %v395
    %v412 = vsub.f32 %v363, %v398
    %v413 = vsub.f32 %v364, %v401
    %v414 = vmul.f32 %v402, 1.442695
    %v415 = vpow.pop %v414
    %v416 = vmul.f32 %v403, 1.442695
    %v417 = vpow.pop %v416
    %v418 = vmul.f32 %v404, 1.442695
    %v419 = vpow.pop %v418
    %v420 = vmul.f32 %v405, 1.442695
    %v421 = vpow.pop %v420
    %v422 = vmul.f32 %v406, 1.442695
    %v423 = vpow.pop %v422
    %v424 = vmul.f32 %v407, 1.442695
    %v425 = vpow.pop %v424
    %v426 = vmul.f32 %v408, 1.442695
    %v427 = vpow.pop %v426
    %v428 = vmul.f32 %v409, 1.442695
    %v429 = vpow.pop %v428
    %v430 = vmul.f32 %v410, 1.442695
    %v431 = vpow.pop %v430
    %v432 = vmul.f32 %v411, 1.442695
    %v433 = vpow.pop %v432
    %v434 = vmul.f32 %v412, 1.442695
    %v435 = vpow.pop %v434
    %v436 = vmul.f32 %v413, 1.442695
    %v437 = vpow.pop %v436
    %v438 = vsel %vm365, %v415, 0.0
    %439 = vadd.xlane.f32.xlu0 %v438
    %v440 = vpop.xlane.xlu0 %439
    %v441 = vsel %vm365, %v417, 0.0
    %442 = vadd.xlane.f32.xlu0 %v441
    %v443 = vpop.xlane.xlu0 %442
    %v444 = vsel %vm365, %v419, 0.0
    %445 = vadd.xlane.f32.xlu0 %v444
    %v446 = vpop.xlane.xlu0 %445
    %v447 = vsel %vm365, %v421, 0.0
    %448 = vadd.xlane.f32.xlu0 %v447
    %v449 = vpop.xlane.xlu0 %448
    %v450 = vsel %vm365, %v423, 0.0
    %451 = vadd.xlane.f32.xlu0 %v450
    %v452 = vpop.xlane.xlu0 %451
    %v453 = vsel %vm365, %v425, 0.0
    %454 = vadd.xlane.f32.xlu0 %v453
    %v455 = vpop.xlane.xlu0 %454
    %v456 = vsel %vm365, %v427, 0.0
    %457 = vadd.xlane.f32.xlu0 %v456
    %v458 = vpop.xlane.xlu0 %457
    %v459 = vsel %vm365, %v429, 0.0
    %460 = vadd.xlane.f32.xlu0 %v459
    %v461 = vpop.xlane.xlu0 %460
    %v462 = vsel %vm365, %v431, 0.0
    %463 = vadd.xlane.f32.xlu0 %v462
    %v464 = vpop.xlane.xlu0 %463
    %v465 = vsel %vm365, %v433, 0.0
    %466 = vadd.xlane.f32.xlu0 %v465
    %v467 = vpop.xlane.xlu0 %466
    %v468 = vsel %vm365, %v435, 0.0
    %469 = vadd.xlane.f32.xlu0 %v468
    %v470 = vpop.xlane.xlu0 %469
    %v471 = vsel %vm365, %v437, 0.0
    %472 = vadd.xlane.f32.xlu0 %v471
    %v473 = vpop.xlane.xlu0 %472
    %v474 = vrcp.pop %v440
    %v475 = vrcp.pop %v443
    %v476 = vrcp.pop %v446
    %v477 = vrcp.pop %v449
    %v478 = vrcp.pop %v452
    %v479 = vrcp.pop %v455
    %v480 = vrcp.pop %v458
    %v481 = vrcp.pop %v461
    %v482 = vrcp.pop %v464
    %v483 = vrcp.pop %v467
    %v484 = vrcp.pop %v470
    %v485 = vrcp.pop %v473
    %v486 = vmul.f32 %v415, %v474
    %v487 = vmul.f32 %v417, %v475
    %v488 = vmul.f32 %v419, %v476
    %v489 = vmul.f32 %v421, %v477
    %v490 = vmul.f32 %v423, %v478
    %v491 = vmul.f32 %v425, %v479
    %v492 = vmul.f32 %v427, %v480
    %v493 = vmul.f32 %v429, %v481
    %v494 = vmul.f32 %v431, %v482
    %v495 = vmul.f32 %v433, %v483
    %v496 = vmul.f32 %v435, %v484
    %v497 = vmul.f32 %v437, %v485
    %v498 = vpack.c.bf16 %v487, %v486
    %v499 = vpack.c.bf16 %v488, %v488
    %v500 = vpack.c.bf16 %v490, %v489
    %v501 = vpack.c.bf16 %v491, %v491
    %v502 = vpack.c.bf16 %v493, %v492
    %v503 = vpack.c.bf16 %v494, %v494
    %v504 = vpack.c.bf16 %v496, %v495
    %v505 = vpack.c.bf16 %v497, %v497
    %v506 = vpack.c.bf16 %v122, %v119
    %v507 = vpack.c.bf16 %v127, %v127
    %v509 = vsel %vm365, %v498, 0
    %v512 = vsel %vm365, %v499, 0
    %v515 = vsel %vm80, %v507, 0
    %517 = vmatprep.subr.bf16.mxu0 0
    %518 = vmatpush1.bf16.msra.mxu0 0
    %519 = vmatprep.subr.bf16.mxu0 0
    %520 = vmatpush1.bf16.msra.mxu0 0
    %521 = vmatprep.subr.bf16.mxu0 0
    %522 = vmatpush1.bf16.msra.mxu0 0
    %523 = vmatprep.subr.bf16.mxu0 0
    %524 = vmatpush1.bf16.msra.mxu0 0
    %525 = vmatprep.subr.bf16.mxu0 0
    %526 = vmatpush1.bf16.msra.mxu0 0
    %527 = vmatprep.subr.bf16.mxu0 0
    %528 = vmatpush1.bf16.msra.mxu0 0
    %529 = vmatprep.subr.bf16.mxu0 0
    %530 = vmatpush1.bf16.msra.mxu0 %v515
    %531 = vmatprep.subr.bf16.mxu0 0
    %532 = vmatpush1.bf16.msra.mxu0 %v506
    %533 = vmatprep.subr.bf16.mxu0 0
    %534 = vmatpush2.bf16.msra.mxu0 0
    %535 = vmatprep.subr.bf16.mxu0 0
    %536 = vmatpush2.bf16.msra.mxu0 0
    %537 = vmatprep.subr.bf16.mxu0 0
    %538 = vmatpush2.bf16.msra.mxu0 0
    %539 = vmatprep.subr.bf16.mxu0 0
    %540 = vmatpush2.bf16.msra.mxu0 0
    %541 = vmatprep.subr.bf16.mxu0 0
    %542 = vmatpush2.bf16.msra.mxu0 0
    %543 = vmatprep.subr.bf16.mxu0 0
    %544 = vmatpush2.bf16.msra.mxu0 0
    %545 = vmatprep.subr.bf16.mxu0 0
    %546 = vmatpush2.bf16.msra.mxu0 0
    %547 = vmatprep.subr.bf16.mxu0 0
    %548 = vmatpush2.bf16.msra.mxu0 0
    %549 = vmatprep.mubr.bf16.mxu0 0
    %550 = vmatmul.mubr.bf16.gmra.mxu0 %v509
    %v551 = vpop.f32.mrf.mxu0
    %v552 = vadd.f32 0.0, %v551
    %v553 = vpop.f32.mrf.mxu0
    %v554 = vpop.f32.mrf.mxu0
    %v555 = vadd.f32 0.0, %v554
    %v556 = vpop.f32.mrf.mxu0
    %557 = vmatprep.mubr.bf16.mxu0 0
    %558 = vmatmul.mubr.bf16.gmra.mxu0 %v512
    %v559 = vpop.f32.mrf.mxu0
    %v560 = vadd.f32 0.0, %v559
    %v561 = vpop.f32.mrf.mxu0
    %v562 = vpop.f32.mrf.mxu0
    %v563 = vpop.f32.mrf.mxu0
    %564 = vdwg.mxu0
    %vm565 = vcmask 130048
    %566 = vst.msk [vmem:[#allocation2] sm:$0xff] %vm565, %v552
    %567 = vst.msk [vmem:[#allocation2 + $0x8] sm:$0xff] %vm565, %v555
    %568 = vst.msk [vmem:[#allocation2 + $0x10] sm:$0xff] %vm565, %v560
    %571 = vrot.lane.b32.xlu0 %v506, 112
    %v572 = vpop.permute.xlu0 %571
    %573 = vrot.lane.b32.xlu0 %v507, 112
    %v574 = vpop.permute.xlu0 %573
    %v577 = vsel %vm365, %v500, 0
    %v580 = vsel %vm365, %v501, 0
    %v583 = vsel %vm80, %v574, 0
    %585 = vmatprep.subr.bf16.mxu0 0
    %586 = vmatpush1.bf16.msra.mxu0 0
    %587 = vmatprep.subr.bf16.mxu0 0
    %588 = vmatpush1.bf16.msra.mxu0 0
    %589 = vmatprep.subr.bf16.mxu0 0
    %590 = vmatpush1.bf16.msra.mxu0 0
    %591 = vmatprep.subr.bf16.mxu0 0
    %592 = vmatpush1.bf16.msra.mxu0 0
    %593 = vmatprep.subr.bf16.mxu0 0
    %594 = vmatpush1.bf16.msra.mxu0 0
    %595 = vmatprep.subr.bf16.mxu0 0
    %596 = vmatpush1.bf16.msra.mxu0 0
    %597 = vmatprep.subr.bf16.mxu0 0
    %598 = vmatpush1.bf16.msra.mxu0 %v583
    %599 = vmatprep.subr.bf16.mxu0 0
    %600 = vmatpush1.bf16.msra.mxu0 %v572
    %601 = vmatprep.subr.bf16.mxu0 0
    %602 = vmatpush2.bf16.msra.mxu0 0
    %603 = vmatprep.subr.bf16.mxu0 0
    %604 = vmatpush2.bf16.msra.mxu0 0
    %605 = vmatprep.subr.bf16.mxu0 0
    %606 = vmatpush2.bf16.msra.mxu0 0
    %607 = vmatprep.subr.bf16.mxu0 0
    %608 = vmatpush2.bf16.msra.mxu0 0
    %609 = vmatprep.subr.bf16.mxu0 0
    %610 = vmatpush2.bf16.msra.mxu0 0
    %611 = vmatprep.subr.bf16.mxu0 0
    %612 = vmatpush2.bf16.msra.mxu0 0
    %613 = vmatprep.subr.bf16.mxu0 0
    %614 = vmatpush2.bf16.msra.mxu0 0
    %615 = vmatprep.subr.bf16.mxu0 0
    %616 = vmatpush2.bf16.msra.mxu0 0
    %617 = vmatprep.mubr.bf16.mxu0 0
    %618 = vmatmul.mubr.bf16.gmra.mxu0 %v577
    %v619 = vpop.f32.mrf.mxu0
    %v620 = vadd.f32 0.0, %v619
    %v621 = vpop.f32.mrf.mxu0
    %v622 = vpop.f32.mrf.mxu0
    %v623 = vadd.f32 0.0, %v622
    %v624 = vpop.f32.mrf.mxu0
    %625 = vmatprep.mubr.bf16.mxu0 0
    %626 = vmatmul.mubr.bf16.gmra.mxu0 %v580
    %v627 = vpop.f32.mrf.mxu0
    %v628 = vadd.f32 0.0, %v627
    %v629 = vpop.f32.mrf.mxu0
    %v630 = vpop.f32.mrf.mxu0
    %v631 = vpop.f32.mrf.mxu0
    %632 = vdwg.mxu0
    %636 = vrot.lane.b32.xlu0 %v620, 16
    %v637 = vpop.permute.xlu0 %636
    %638 = vrot.lane.b32.xlu0 %v623, 16
    %v639 = vpop.permute.xlu0 %638
    %640 = vrot.lane.b32.xlu0 %v628, 16
    %v641 = vpop.permute.xlu0 %640
    %vm645 = vcmask 261248
    %646 = vst.msk [vmem:[#allocation2] sm:$0xff] %vm645, %v637
    %647 = vst.msk [vmem:[#allocation2 + $0x8] sm:$0xff] %vm645, %v639
    %648 = vst.msk [vmem:[#allocation2 + $0x10] sm:$0xff] %vm645, %v641
    %649 = vrot.lane.b32.xlu0 %v506, 96
    %v650 = vpop.permute.xlu0 %649
    %651 = vrot.lane.b32.xlu0 %v507, 96
    %v652 = vpop.permute.xlu0 %651
    %v655 = vsel %vm365, %v502, 0
    %v658 = vsel %vm365, %v503, 0
    %v661 = vsel %vm80, %v652, 0
    %663 = vmatprep.subr.bf16.mxu0 0
    %664 = vmatpush1.bf16.msra.mxu0 0
    %665 = vmatprep.subr.bf16.mxu0 0
    %666 = vmatpush1.bf16.msra.mxu0 0
    %667 = vmatprep.subr.bf16.mxu0 0
    %668 = vmatpush1.bf16.msra.mxu0 0
    %669 = vmatprep.subr.bf16.mxu0 0
    %670 = vmatpush1.bf16.msra.mxu0 0
    %671 = vmatprep.subr.bf16.mxu0 0
    %672 = vmatpush1.bf16.msra.mxu0 0
    %673 = vmatprep.subr.bf16.mxu0 0
    %674 = vmatpush1.bf16.msra.mxu0 0
    %675 = vmatprep.subr.bf16.mxu0 0
    %676 = vmatpush1.bf16.msra.mxu0 %v661
    %677 = vmatprep.subr.bf16.mxu0 0
    %678 = vmatpush1.bf16.msra.mxu0 %v650
    %679 = vmatprep.subr.bf16.mxu0 0
    %680 = vmatpush2.bf16.msra.mxu0 0
    %681 = vmatprep.subr.bf16.mxu0 0
    %682 = vmatpush2.bf16.msra.mxu0 0
    %683 = vmatprep.subr.bf16.mxu0 0
    %684 = vmatpush2.bf16.msra.mxu0 0
    %685 = vmatprep.subr.bf16.mxu0 0
    %686 = vmatpush2.bf16.msra.mxu0 0
    %687 = vmatprep.subr.bf16.mxu0 0
    %688 = vmatpush2.bf16.msra.mxu0 0
    %689 = vmatprep.subr.bf16.mxu0 0
    %690 = vmatpush2.bf16.msra.mxu0 0
    %691 = vmatprep.subr.bf16.mxu0 0
    %692 = vmatpush2.bf16.msra.mxu0 0
    %693 = vmatprep.subr.bf16.mxu0 0
    %694 = vmatpush2.bf16.msra.mxu0 0
    %695 = vmatprep.mubr.bf16.mxu0 0
    %696 = vmatmul.mubr.bf16.gmra.mxu0 %v655
    %v697 = vpop.f32.mrf.mxu0
    %v698 = vadd.f32 0.0, %v697
    %v699 = vpop.f32.mrf.mxu0
    %v700 = vpop.f32.mrf.mxu0
    %v701 = vadd.f32 0.0, %v700
    %v702 = vpop.f32.mrf.mxu0
    %703 = vmatprep.mubr.bf16.mxu0 0
    %704 = vmatmul.mubr.bf16.gmra.mxu0 %v658
    %v705 = vpop.f32.mrf.mxu0
    %v706 = vadd.f32 0.0, %v705
    %v707 = vpop.f32.mrf.mxu0
    %v708 = vpop.f32.mrf.mxu0
    %v709 = vpop.f32.mrf.mxu0
    %710 = vdwg.mxu0
    %714 = vrot.lane.b32.xlu0 %v698, 32
    %v715 = vpop.permute.xlu0 %714
    %716 = vrot.lane.b32.xlu0 %v701, 32
    %v717 = vpop.permute.xlu0 %716
    %718 = vrot.lane.b32.xlu0 %v706, 32
    %v719 = vpop.permute.xlu0 %718
    %vm723 = vcmask 392448
    %724 = vst.msk [vmem:[#allocation2] sm:$0xff] %vm723, %v715
    %725 = vst.msk [vmem:[#allocation2 + $0x8] sm:$0xff] %vm723, %v717
    %726 = vst.msk [vmem:[#allocation2 + $0x10] sm:$0xff] %vm723, %v719
    %727 = vrot.lane.b32.xlu0 %v506, 80
    %v728 = vpop.permute.xlu0 %727
    %729 = vrot.lane.b32.xlu0 %v507, 80
    %v730 = vpop.permute.xlu0 %729
    %v733 = vsel %vm365, %v504, 0
    %v736 = vsel %vm365, %v505, 0
    %v739 = vsel %vm80, %v730, 0
    %741 = vmatprep.subr.bf16.mxu0 0
    %742 = vmatpush1.bf16.msra.mxu0 0
    %743 = vmatprep.subr.bf16.mxu0 0
    %744 = vmatpush1.bf16.msra.mxu0 0
    %745 = vmatprep.subr.bf16.mxu0 0
    %746 = vmatpush1.bf16.msra.mxu0 0
    %747 = vmatprep.subr.bf16.mxu0 0
    %748 = vmatpush1.bf16.msra.mxu0 0
    %749 = vmatprep.subr.bf16.mxu0 0
    %750 = vmatpush1.bf16.msra.mxu0 0
    %751 = vmatprep.subr.bf16.mxu0 0
    %752 = vmatpush1.bf16.msra.mxu0 0
    %753 = vmatprep.subr.bf16.mxu0 0
    %754 = vmatpush1.bf16.msra.mxu0 %v739
    %755 = vmatprep.subr.bf16.mxu0 0
    %756 = vmatpush1.bf16.msra.mxu0 %v728
    %757 = vmatprep.subr.bf16.mxu0 0
    %758 = vmatpush2.bf16.msra.mxu0 0
    %759 = vmatprep.subr.bf16.mxu0 0
    %760 = vmatpush2.bf16.msra.mxu0 0
    %761 = vmatprep.subr.bf16.mxu0 0
    %762 = vmatpush2.bf16.msra.mxu0 0
    %763 = vmatprep.subr.bf16.mxu0 0
    %764 = vmatpush2.bf16.msra.mxu0 0
    %765 = vmatprep.subr.bf16.mxu0 0
    %766 = vmatpush2.bf16.msra.mxu0 0
    %767 = vmatprep.subr.bf16.mxu0 0
    %768 = vmatpush2.bf16.msra.mxu0 0
    %769 = vmatprep.subr.bf16.mxu0 0
    %770 = vmatpush2.bf16.msra.mxu0 0
    %771 = vmatprep.subr.bf16.mxu0 0
    %772 = vmatpush2.bf16.msra.mxu0 0
    %773 = vmatprep.mubr.bf16.mxu0 0
    %774 = vmatmul.mubr.bf16.gmra.mxu0 %v733
    %v775 = vpop.f32.mrf.mxu0
    %v776 = vadd.f32 0.0, %v775
    %v777 = vpop.f32.mrf.mxu0
    %v778 = vpop.f32.mrf.mxu0
    %v779 = vadd.f32 0.0, %v778
    %v780 = vpop.f32.mrf.mxu0
    %781 = vmatprep.mubr.bf16.mxu0 0
    %782 = vmatmul.mubr.bf16.gmra.mxu0 %v736
    %v783 = vpop.f32.mrf.mxu0
    %v784 = vadd.f32 0.0, %v783
    %v785 = vpop.f32.mrf.mxu0
    %v786 = vpop.f32.mrf.mxu0
    %v787 = vpop.f32.mrf.mxu0
    %788 = vdwg.mxu0
    %792 = vrot.lane.b32.xlu0 %v776, 48
    %v793 = vpop.permute.xlu0 %792
    %794 = vrot.lane.b32.xlu0 %v779, 48
    %v795 = vpop.permute.xlu0 %794
    %796 = vrot.lane.b32.xlu0 %v784, 48
    %v797 = vpop.permute.xlu0 %796
    %vm801 = vcmask 523648
    %802 = vst.msk [vmem:[#allocation2] sm:$0xff] %vm801, %v793
    %803 = vst.msk [vmem:[#allocation2 + $0x8] sm:$0xff] %vm801, %v795
    %804 = vst.msk [vmem:[#allocation2 + $0x10] sm:$0xff] %vm801, %v797
    %v805 = vld [vmem:[#allocation2] sm:$0xff]
    %v806 = vld [vmem:[#allocation2 + $0x8] sm:$0xff]
    %v807 = vld [vmem:[#allocation2 + $0x10] sm:$0xff]
    %v808 = vld [vmem:[%s3] sm:$0x1]
    %v810 = vlaneseq
    %v811 = vshrl.u32 %v810, 7
    %v812 = vsub.s32 0, %v811
    %v813 = vrot.slane %v808, %v812
    %v815 = vadd.f32 %v805, %v813
    %v816 = vadd.f32 %v806, %v813
    %v817 = vadd.f32 %v807, %v813
    %v818 = vmax.f32 %v815, 0.0
    %v819 = vmax.f32 %v816, 0.0
    %v820 = vmax.f32 %v817, 0.0
    %v821 = vld [vmem:[%s4] sm:$0x1]
    %v822 = vld [vmem:[%s5] sm:$0x1]
    %vm823 = vcmask 523264
    %v824 = vsel %vm823, %v818, 0.0
    %825 = vadd.xlane.f32.xlu0 %v824
    %v826 = vpop.xlane.xlu0 %825
    %v827 = vsel %vm823, %v819, 0.0
    %828 = vadd.xlane.f32.xlu0 %v827
    %v829 = vpop.xlane.xlu0 %828
    %v830 = vsel %vm823, %v820, 0.0
    %831 = vadd.xlane.f32.xlu0 %v830
    %v832 = vpop.xlane.xlu0 %831
    %v833 = vrcp.pop 64.0
    %v834 = vmul.f32 %v826, %v833
    %v835 = vmul.f32 %v829, %v833
    %v836 = vmul.f32 %v832, %v833
    %v837 = vsub.f32 %v818, %v834
    %v838 = vsub.f32 %v819, %v835
    %v839 = vsub.f32 %v820, %v836
    %v840 = vmul.f32 %v837, %v837
    %v841 = vmul.f32 %v838, %v838
    %v842 = vmul.f32 %v839, %v839
    %v843 = vsel %vm823, %v840, 0.0
    %844 = vadd.xlane.f32.xlu0 %v843
    %v845 = vpop.xlane.xlu0 %844
    %v846 = vsel %vm823, %v841, 0.0
    %847 = vadd.xlane.f32.xlu0 %v846
    %v848 = vpop.xlane.xlu0 %847
    %v849 = vsel %vm823, %v842, 0.0
    %850 = vadd.xlane.f32.xlu0 %v849
    %v851 = vpop.xlane.xlu0 %850
    %v852 = vmul.f32 %v845, %v833
    %v853 = vmul.f32 %v848, %v833
    %v854 = vmul.f32 %v851, %v833
    %v855 = vadd.f32 %v852, 1e-05
    %v856 = vadd.f32 %v853, 1e-05
    %v857 = vadd.f32 %v854, 1e-05
    %v858 = vrsqrt.pop %v855
    %v859 = vrsqrt.pop %v856
    %v860 = vrsqrt.pop %v857
    %v861 = vmul.f32 %v837, %v858
    %v862 = vmul.f32 %v838, %v859
    %v863 = vmul.f32 %v839, %v860
    %v865 = vlaneseq
    %v866 = vshrl.u32 %v865, 7
    %v867 = vsub.s32 0, %v866
    %v868 = vrot.slane %v821, %v867
    %v870 = vmul.f32 %v861, %v868
    %v871 = vmul.f32 %v862, %v868
    %v872 = vmul.f32 %v863, %v868
    %v874 = vlaneseq
    %v875 = vshrl.u32 %v874, 7
    %v876 = vsub.s32 0, %v875
    %v877 = vrot.slane %v822, %v876
    %v879 = vadd.f32 %v870, %v877
    %v880 = vadd.f32 %v871, %v877
    %v881 = vadd.f32 %v872, %v877
    %v882 = vpack.c.bf16 %v880, %v879
    %v883 = vpack.c.bf16 %v881, %v881
    %v884 = vld [vmem:[%s6] sm:$0xf]
    %v885 = vld [vmem:[%s6 + $0x4] sm:$0xf]
    %v886 = vld [vmem:[%s6 + $0x8] sm:$0xf]
    %v887 = vld [vmem:[%s6 + $0xc] sm:$0xf]
    %v888 = vld [vmem:[%s6 + $0x10] sm:$0xf]
    %v889 = vld [vmem:[%s6 + $0x14] sm:$0xf]
    %v890 = vld [vmem:[%s6 + $0x18] sm:$0xf]
    %v891 = vld [vmem:[%s6 + $0x1c] sm:$0xf]
    %v900 = vunpack.c.l.b16 %v884
    %v901 = vunpack.c.l.b16 %v885
    %v902 = vunpack.c.l.b16 %v886
    %v903 = vunpack.c.l.b16 %v887
    %v904 = vunpack.c.l.b16 %v888
    %v905 = vunpack.c.l.b16 %v889
    %v906 = vunpack.c.l.b16 %v890
    %v907 = vunpack.c.l.b16 %v891
    %v908 = vpack.c.b16 %v901, %v900
    %v909 = vpack.c.b16 %v903, %v902
    %v910 = vpack.c.b16 %v905, %v904
    %v911 = vpack.c.b16 %v907, %v906
    %v917 = vsel %vm823, %v882, 0
    %v920 = vsel %vm823, %v883, 0
    %922 = vmatprep.subr.bf16.mxu0 0
    %923 = vmatpush1.bf16.msra.mxu0 0
    %924 = vmatprep.subr.bf16.mxu0 0
    %925 = vmatpush1.bf16.msra.mxu0 0
    %926 = vmatprep.subr.bf16.mxu0 0
    %927 = vmatpush1.bf16.msra.mxu0 0
    %928 = vmatprep.subr.bf16.mxu0 0
    %929 = vmatpush1.bf16.msra.mxu0 0
    %930 = vmatprep.subr.bf16.mxu0 0
    %931 = vmatpush1.bf16.msra.mxu0 %v911
    %932 = vmatprep.subr.bf16.mxu0 0
    %933 = vmatpush1.bf16.msra.mxu0 %v910
    %934 = vmatprep.subr.bf16.mxu0 0
    %935 = vmatpush1.bf16.msra.mxu0 %v909
    %936 = vmatprep.subr.bf16.mxu0 0
    %937 = vmatpush1.bf16.msra.mxu0 %v908
    %938 = vmatprep.subr.bf16.mxu0 0
    %939 = vmatpush2.bf16.msra.mxu0 0
    %940 = vmatprep.subr.bf16.mxu0 0
    %941 = vmatpush2.bf16.msra.mxu0 0
    %942 = vmatprep.subr.bf16.mxu0 0
    %943 = vmatpush2.bf16.msra.mxu0 0
    %944 = vmatprep.subr.bf16.mxu0 0
    %945 = vmatpush2.bf16.msra.mxu0 0
    %946 = vmatprep.subr.bf16.mxu0 0
    %947 = vmatpush2.bf16.msra.mxu0 0
    %948 = vmatprep.subr.bf16.mxu0 0
    %949 = vmatpush2.bf16.msra.mxu0 0
    %950 = vmatprep.subr.bf16.mxu0 0
    %951 = vmatpush2.bf16.msra.mxu0 0
    %952 = vmatprep.subr.bf16.mxu0 0
    %953 = vmatpush2.bf16.msra.mxu0 0
    %954 = vmatprep.mubr.bf16.mxu0 0
    %955 = vmatmul.mubr.bf16.gmra.mxu0 %v917
    %v956 = vpop.f32.mrf.mxu0
    %v957 = vadd.f32 0.0, %v956
    %v958 = vpop.f32.mrf.mxu0
    %v959 = vpop.f32.mrf.mxu0
    %v960 = vadd.f32 0.0, %v959
    %v961 = vpop.f32.mrf.mxu0
    %962 = vmatprep.mubr.bf16.mxu0 0
    %963 = vmatmul.mubr.bf16.gmra.mxu0 %v920
    %v964 = vpop.f32.mrf.mxu0
    %v965 = vadd.f32 0.0, %v964
    %v966 = vpop.f32.mrf.mxu0
    %v967 = vpop.f32.mrf.mxu0
    %v968 = vpop.f32.mrf.mxu0
    %969 = vdwg.mxu0
    %973 = vrot.lane.b32.xlu0 %v957, 64
    %v974 = vpop.permute.xlu0 %973
    %975 = vrot.lane.b32.xlu0 %v960, 64
    %v976 = vpop.permute.xlu0 %975
    %977 = vrot.lane.b32.xlu0 %v965, 64
    %v978 = vpop.permute.xlu0 %977
    %982 = vxpose.xlu0.b32.start [1/16] %v974, 128
    %983 = vxpose.xlu0.b32.cont [2/16] %v976, 128
    %984 = vxpose.xlu0.b32.cont [3/16] %v978, 128
    %985 = vxpose.xlu0.b32.cont [4/16] 0.0, 128
    %986 = vxpose.xlu0.b32.cont [5/16] 0.0, 128
    %987 = vxpose.xlu0.b32.cont [6/16] 0.0, 128
    %988 = vxpose.xlu0.b32.cont [7/16] 0.0, 128
    %989 = vxpose.xlu0.b32.cont [8/16] 0.0, 128
    %990 = vxpose.xlu0.b32.cont [9/16] 0.0, 128
    %991 = vxpose.xlu0.b32.cont [10/16] 0.0, 128
    %992 = vxpose.xlu0.b32.cont [11/16] 0.0, 128
    %993 = vxpose.xlu0.b32.cont [12/16] 0.0, 128
    %994 = vxpose.xlu0.b32.cont [13/16] 0.0, 128
    %995 = vxpose.xlu0.b32.cont [14/16] 0.0, 128
    %996 = vxpose.xlu0.b32.cont [15/16] 0.0, 128
    %997 = vxpose.xlu0.b32.end [16/16] 0.0, 128
    %v998 = vpop.trf.xlu0
    %v999 = vpop.trf.xlu0
    %v1000 = vpop.trf.xlu0
    %v1001 = vpop.trf.xlu0
    %v1002 = vpop.trf.xlu0
    %v1003 = vpop.trf.xlu0
    %v1004 = vpop.trf.xlu0
    %v1005 = vpop.trf.xlu0
    %v1006 = vpop.trf.xlu0
    %v1007 = vpop.trf.xlu0
    %v1008 = vpop.trf.xlu0
    %v1009 = vpop.trf.xlu0
    %v1010 = vpop.trf.xlu0
    %v1011 = vpop.trf.xlu0
    %v1012 = vpop.trf.xlu0
    %v1013 = vpop.trf.xlu0
    %v1014 = vlaneseq
    %v1015 = vshrl.u32 %v1014, 7
    %v1016 = vsub.s32 4, %v1015
    %v1017 = vrot.slane %v998, %v1016
    %1019 = vbcast.lane.b32.xlu0 %v1017, 256
    %v1020 = vpop.permute.xlu0 %1019
    %s1022 = sor.u32 256, 8
    %1023 = vbcast.lane.b32.xlu0 %v1017, %s1022
    %v1024 = vpop.permute.xlu0 %1023
    %s1026 = sor.u32 256, 16
    %1027 = vbcast.lane.b32.xlu0 %v1017, %s1026
    %v1028 = vpop.permute.xlu0 %1027
    %v1029 = vlaneseq
    %v1030 = vshrl.u32 %v1029, 7
    %v1031 = vsub.s32 5, %v1030
    %v1032 = vrot.slane %v998, %v1031
    %1034 = vbcast.lane.b32.xlu0 %v1032, 256
    %v1035 = vpop.permute.xlu0 %1034
    %s1037 = sor.u32 256, 8
    %1038 = vbcast.lane.b32.xlu0 %v1032, %s1037
    %v1039 = vpop.permute.xlu0 %1038
    %s1041 = sor.u32 256, 16
    %1042 = vbcast.lane.b32.xlu0 %v1032, %s1041
    %v1043 = vpop.permute.xlu0 %1042
    %v1044 = vlaneseq
    %v1045 = vshrl.u32 %v1044, 7
    %v1046 = vsub.s32 6, %v1045
    %v1047 = vrot.slane %v998, %v1046
    %1049 = vbcast.lane.b32.xlu0 %v1047, 256
    %v1050 = vpop.permute.xlu0 %1049
    %s1052 = sor.u32 256, 8
    %1053 = vbcast.lane.b32.xlu0 %v1047, %s1052
    %v1054 = vpop.permute.xlu0 %1053
    %s1056 = sor.u32 256, 16
    %1057 = vbcast.lane.b32.xlu0 %v1047, %s1056
    %v1058 = vpop.permute.xlu0 %1057
    %v1059 = vlaneseq
    %v1060 = vshrl.u32 %v1059, 7
    %v1061 = vsub.s32 7, %v1060
    %v1062 = vrot.slane %v998, %v1061
    %1064 = vbcast.lane.b32.xlu0 %v1062, 256
    %v1065 = vpop.permute.xlu0 %1064
    %s1067 = sor.u32 256, 8
    %1068 = vbcast.lane.b32.xlu0 %v1062, %s1067
    %v1069 = vpop.permute.xlu0 %1068
    %s1071 = sor.u32 256, 16
    %1072 = vbcast.lane.b32.xlu0 %v1062, %s1071
    %v1073 = vpop.permute.xlu0 %1072
    %v1076 = vunpack.c.l.s4 1966171168
    %v1077 = vunpack.c.0.s8 %v1076
    %v1078 = vlaneseq
    %v1079 = vshrl.u32 %v1078, 7
    %v1080 = vsub.s32 %v1077, %v1079
    %v1081 = vrot.slane %v998, %v1080
    %v1082 = vcombine.high %v1081, %v1081
    %v1084 = vunpack.c.l.s4 1966171168
    %v1085 = vunpack.c.0.s8 %v1084
    %v1086 = vlaneseq
    %v1087 = vshrl.u32 %v1086, 7
    %v1088 = vsub.s32 %v1085, %v1087
    %v1089 = vrot.slane %v1081, %v1088
    %v1091 = vunpack.c.l.s4 1966171168
    %v1092 = vunpack.c.0.s8 %v1091
    %v1093 = vlaneseq
    %v1094 = vshrl.u32 %v1093, 7
    %v1095 = vsub.s32 %v1092, %v1094
    %v1096 = vrot.slane %v1082, %v1095
    %v1097 = vcombine.high %v1089, %v1089
    %v1098 = vcombine.high %v1096, %v1096
    %v1099 = vlaneseq
    %v1100 = vshrl.u32 %v1099, 7
    %v1101 = vsub.s32 0, %v1100
    %v1102 = vrot.slane %v1089, %v1101
    %v1103 = vlaneseq
    %v1104 = vshrl.u32 %v1103, 7
    %v1105 = vsub.s32 0, %v1104
    %v1106 = vrot.slane %v1096, %v1105
    %v1107 = vlaneseq
    %v1108 = vshrl.u32 %v1107, 7
    %v1109 = vsub.s32 0, %v1108
    %v1110 = vrot.slane %v1097, %v1109
    %v1111 = vlaneseq
    %v1112 = vshrl.u32 %v1111, 7
    %v1113 = vsub.s32 0, %v1112
    %v1114 = vrot.slane %v1098, %v1113
    %v1119 = vadd.f32 %v1020, %v1102
    %v1120 = vadd.f32 %v1024, %v1102
    %v1121 = vadd.f32 %v1028, %v1102
    %v1122 = vadd.f32 %v1035, %v1106
    %v1123 = vadd.f32 %v1039, %v1106
    %v1124 = vadd.f32 %v1043, %v1106
    %v1125 = vadd.f32 %v1050, %v1110
    %v1126 = vadd.f32 %v1054, %v1110
    %v1127 = vadd.f32 %v1058, %v1110
    %v1128 = vadd.f32 %v1065, %v1114
    %v1129 = vadd.f32 %v1069, %v1114
    %v1130 = vadd.f32 %v1073, %v1114
    %v1131 = vld [vmem:[%s7] sm:$0xf]
    %v1132 = vld [vmem:[%s7 + $0x4] sm:$0xf]
    %v1133 = vld [vmem:[%s7 + $0x8] sm:$0xf]
    %v1134 = vld [vmem:[%s7 + $0xc] sm:$0xf]
    %v1135 = vld [vmem:[%s7 + $0x10] sm:$0xf]
    %v1136 = vld [vmem:[%s7 + $0x14] sm:$0xf]
    %v1137 = vld [vmem:[%s7 + $0x18] sm:$0xf]
    %v1138 = vld [vmem:[%s7 + $0x1c] sm:$0xf]
    %v1139 = vld [vmem:[%s7 + $0x20] sm:$0xf]
    %v1140 = vld [vmem:[%s7 + $0x24] sm:$0xf]
    %v1141 = vld [vmem:[%s7 + $0x28] sm:$0xf]
    %v1142 = vld [vmem:[%s7 + $0x2c] sm:$0xf]
    %v1143 = vunpack.c.l.bf16 %v1131
    %v1144 = vunpack.c.l.bf16 %v1132
    %v1145 = vunpack.c.l.bf16 %v1133
    %v1146 = vunpack.c.l.bf16 %v1134
    %v1147 = vunpack.c.l.bf16 %v1135
    %v1148 = vunpack.c.l.bf16 %v1136
    %v1149 = vunpack.c.l.bf16 %v1137
    %v1150 = vunpack.c.l.bf16 %v1138
    %v1151 = vunpack.c.l.bf16 %v1139
    %v1152 = vunpack.c.l.bf16 %v1140
    %v1153 = vunpack.c.l.bf16 %v1141
    %v1154 = vunpack.c.l.bf16 %v1142
    %v1155 = vadd.f32 %v1119, %v1143
    %v1156 = vadd.f32 %v1120, %v1144
    %v1157 = vadd.f32 %v1121, %v1145
    %v1158 = vadd.f32 %v1122, %v1146
    %v1159 = vadd.f32 %v1123, %v1147
    %v1160 = vadd.f32 %v1124, %v1148
    %v1161 = vadd.f32 %v1125, %v1149
    %v1162 = vadd.f32 %v1126, %v1150
    %v1163 = vadd.f32 %v1127, %v1151
    %v1164 = vadd.f32 %v1128, %v1152
    %v1165 = vadd.f32 %v1129, %v1153
    %v1166 = vadd.f32 %v1130, %v1154
    %vm1167 = vcmp.gt.f32.partialorder %v1155, 0.0
    %vm1168 = vcmp.gt.f32.partialorder %v1156, 0.0
    %vm1169 = vcmp.gt.f32.partialorder %v1157, 0.0
    %vm1170 = vcmp.gt.f32.partialorder %v1158, 0.0
    %vm1171 = vcmp.gt.f32.partialorder %v1159, 0.0
    %vm1172 = vcmp.gt.f32.partialorder %v1160, 0.0
    %vm1173 = vcmp.gt.f32.partialorder %v1161, 0.0
    %vm1174 = vcmp.gt.f32.partialorder %v1162, 0.0
    %vm1175 = vcmp.gt.f32.partialorder %v1163, 0.0
    %vm1176 = vcmp.gt.f32.partialorder %v1164, 0.0
    %vm1177 = vcmp.gt.f32.partialorder %v1165, 0.0
    %vm1178 = vcmp.gt.f32.partialorder %v1166, 0.0
    %v1179 = vmul.f32 %v1155, 0.2
    %v1180 = vmul.f32 %v1156, 0.2
    %v1181 = vmul.f32 %v1157, 0.2
    %v1182 = vmul.f32 %v1158, 0.2
    %v1183 = vmul.f32 %v1159, 0.2
    %v1184 = vmul.f32 %v1160, 0.2
    %v1185 = vmul.f32 %v1161, 0.2
    %v1186 = vmul.f32 %v1162, 0.2
    %v1187 = vmul.f32 %v1163, 0.2
    %v1188 = vmul.f32 %v1164, 0.2
    %v1189 = vmul.f32 %v1165, 0.2
    %v1190 = vmul.f32 %v1166, 0.2
    %v1191 = vsel %vm1167, %v1155, %v1179
    %v1192 = vsel %vm1168, %v1156, %v1180
    %v1193 = vsel %vm1169, %v1157, %v1181
    %v1194 = vsel %vm1170, %v1158, %v1182
    %v1195 = vsel %vm1171, %v1159, %v1183
    %v1196 = vsel %vm1172, %v1160, %v1184
    %v1197 = vsel %vm1173, %v1161, %v1185
    %v1198 = vsel %vm1174, %v1162, %v1186
    %v1199 = vsel %vm1175, %v1163, %v1187
    %v1200 = vsel %vm1176, %v1164, %v1188
    %v1201 = vsel %vm1177, %v1165, %v1189
    %v1202 = vsel %vm1178, %v1166, %v1190
    %v1203 = vsel %vm365, %v1191, -inf
    %1204 = vmax.xlane.f32.xlu0 %v1203
    %v1205 = vpop.xlane.xlu0 %1204
    %v1206 = vsel %vm365, %v1192, -inf
    %1207 = vmax.xlane.f32.xlu0 %v1206
    %v1208 = vpop.xlane.xlu0 %1207
    %v1209 = vsel %vm365, %v1193, -inf
    %1210 = vmax.xlane.f32.xlu0 %v1209
    %v1211 = vpop.xlane.xlu0 %1210
    %v1212 = vsel %vm365, %v1194, -inf
    %1213 = vmax.xlane.f32.xlu0 %v1212
    %v1214 = vpop.xlane.xlu0 %1213
    %v1215 = vsel %vm365, %v1195, -inf
    %1216 = vmax.xlane.f32.xlu0 %v1215
    %v1217 = vpop.xlane.xlu0 %1216
    %v1218 = vsel %vm365, %v1196, -inf
    %1219 = vmax.xlane.f32.xlu0 %v1218
    %v1220 = vpop.xlane.xlu0 %1219
    %v1221 = vsel %vm365, %v1197, -inf
    %1222 = vmax.xlane.f32.xlu0 %v1221
    %v1223 = vpop.xlane.xlu0 %1222
    %v1224 = vsel %vm365, %v1198, -inf
    %1225 = vmax.xlane.f32.xlu0 %v1224
    %v1226 = vpop.xlane.xlu0 %1225
    %v1227 = vsel %vm365, %v1199, -inf
    %1228 = vmax.xlane.f32.xlu0 %v1227
    %v1229 = vpop.xlane.xlu0 %1228
    %v1230 = vsel %vm365, %v1200, -inf
    %1231 = vmax.xlane.f32.xlu0 %v1230
    %v1232 = vpop.xlane.xlu0 %1231
    %v1233 = vsel %vm365, %v1201, -inf
    %1234 = vmax.xlane.f32.xlu0 %v1233
    %v1235 = vpop.xlane.xlu0 %1234
    %v1236 = vsel %vm365, %v1202, -inf
    %1237 = vmax.xlane.f32.xlu0 %v1236
    %v1238 = vpop.xlane.xlu0 %1237
    %v1239 = vsub.f32 %v1191, %v1205
    %v1240 = vsub.f32 %v1192, %v1208
    %v1241 = vsub.f32 %v1193, %v1211
    %v1242 = vsub.f32 %v1194, %v1214
    %v1243 = vsub.f32 %v1195, %v1217
    %v1244 = vsub.f32 %v1196, %v1220
    %v1245 = vsub.f32 %v1197, %v1223
    %v1246 = vsub.f32 %v1198, %v1226
    %v1247 = vsub.f32 %v1199, %v1229
    %v1248 = vsub.f32 %v1200, %v1232
    %v1249 = vsub.f32 %v1201, %v1235
    %v1250 = vsub.f32 %v1202, %v1238
    %v1251 = vmul.f32 %v1239, 1.442695
    %v1252 = vpow.pop %v1251
    %v1253 = vmul.f32 %v1240, 1.442695
    %v1254 = vpow.pop %v1253
    %v1255 = vmul.f32 %v1241, 1.442695
    %v1256 = vpow.pop %v1255
    %v1257 = vmul.f32 %v1242, 1.442695
    %v1258 = vpow.pop %v1257
    %v1259 = vmul.f32 %v1243, 1.442695
    %v1260 = vpow.pop %v1259
    %v1261 = vmul.f32 %v1244, 1.442695
    %v1262 = vpow.pop %v1261
    %v1263 = vmul.f32 %v1245, 1.442695
    %v1264 = vpow.pop %v1263
    %v1265 = vmul.f32 %v1246, 1.442695
    %v1266 = vpow.pop %v1265
    %v1267 = vmul.f32 %v1247, 1.442695
    %v1268 = vpow.pop %v1267
    %v1269 = vmul.f32 %v1248, 1.442695
    %v1270 = vpow.pop %v1269
    %v1271 = vmul.f32 %v1249, 1.442695
    %v1272 = vpow.pop %v1271
    %v1273 = vmul.f32 %v1250, 1.442695
    %v1274 = vpow.pop %v1273
    %v1275 = vsel %vm365, %v1252, 0.0
    %1276 = vadd.xlane.f32.xlu0 %v1275
    %v1277 = vpop.xlane.xlu0 %1276
    %v1278 = vsel %vm365, %v1254, 0.0
    %1279 = vadd.xlane.f32.xlu0 %v1278
    %v1280 = vpop.xlane.xlu0 %1279
    %v1281 = vsel %vm365, %v1256, 0.0
    %1282 = vadd.xlane.f32.xlu0 %v1281
    %v1283 = vpop.xlane.xlu0 %1282
    %v1284 = vsel %vm365, %v1258, 0.0
    %1285 = vadd.xlane.f32.xlu0 %v1284
    %v1286 = vpop.xlane.xlu0 %1285
    %v1287 = vsel %vm365, %v1260, 0.0
    %1288 = vadd.xlane.f32.xlu0 %v1287
    %v1289 = vpop.xlane.xlu0 %1288
    %v1290 = vsel %vm365, %v1262, 0.0
    %1291 = vadd.xlane.f32.xlu0 %v1290
    %v1292 = vpop.xlane.xlu0 %1291
    %v1293 = vsel %vm365, %v1264, 0.0
    %1294 = vadd.xlane.f32.xlu0 %v1293
    %v1295 = vpop.xlane.xlu0 %1294
    %v1296 = vsel %vm365, %v1266, 0.0
    %1297 = vadd.xlane.f32.xlu0 %v1296
    %v1298 = vpop.xlane.xlu0 %1297
    %v1299 = vsel %vm365, %v1268, 0.0
    %1300 = vadd.xlane.f32.xlu0 %v1299
    %v1301 = vpop.xlane.xlu0 %1300
    %v1302 = vsel %vm365, %v1270, 0.0
    %1303 = vadd.xlane.f32.xlu0 %v1302
    %v1304 = vpop.xlane.xlu0 %1303
    %v1305 = vsel %vm365, %v1272, 0.0
    %1306 = vadd.xlane.f32.xlu0 %v1305
    %v1307 = vpop.xlane.xlu0 %1306
    %v1308 = vsel %vm365, %v1274, 0.0
    %1309 = vadd.xlane.f32.xlu0 %v1308
    %v1310 = vpop.xlane.xlu0 %1309
    %v1311 = vrcp.pop %v1277
    %v1312 = vrcp.pop %v1280
    %v1313 = vrcp.pop %v1283
    %v1314 = vrcp.pop %v1286
    %v1315 = vrcp.pop %v1289
    %v1316 = vrcp.pop %v1292
    %v1317 = vrcp.pop %v1295
    %v1318 = vrcp.pop %v1298
    %v1319 = vrcp.pop %v1301
    %v1320 = vrcp.pop %v1304
    %v1321 = vrcp.pop %v1307
    %v1322 = vrcp.pop %v1310
    %v1323 = vmul.f32 %v1252, %v1311
    %v1324 = vmul.f32 %v1254, %v1312
    %v1325 = vmul.f32 %v1256, %v1313
    %v1326 = vmul.f32 %v1258, %v1314
    %v1327 = vmul.f32 %v1260, %v1315
    %v1328 = vmul.f32 %v1262, %v1316
    %v1329 = vmul.f32 %v1264, %v1317
    %v1330 = vmul.f32 %v1266, %v1318
    %v1331 = vmul.f32 %v1268, %v1319
    %v1332 = vmul.f32 %v1270, %v1320
    %v1333 = vmul.f32 %v1272, %v1321
    %v1334 = vmul.f32 %v1274, %v1322
    %v1335 = vpack.c.bf16 %v1324, %v1323
    %v1336 = vpack.c.bf16 %v1325, %v1325
    %v1337 = vpack.c.bf16 %v1327, %v1326
    %v1338 = vpack.c.bf16 %v1328, %v1328
    %v1339 = vpack.c.bf16 %v1330, %v1329
    %v1340 = vpack.c.bf16 %v1331, %v1331
    %v1341 = vpack.c.bf16 %v1333, %v1332
    %v1342 = vpack.c.bf16 %v1334, %v1334
    %v1343 = vpack.c.bf16 %v960, %v957
    %v1344 = vpack.c.bf16 %v965, %v965
    %v1346 = vsel %vm365, %v1335, 0
    %v1349 = vsel %vm365, %v1336, 0
    %v1352 = vsel %vm80, %v1344, 0
    %1354 = vmatprep.subr.bf16.mxu0 0
    %1355 = vmatpush1.bf16.msra.mxu0 0
    %1356 = vmatprep.subr.bf16.mxu0 0
    %1357 = vmatpush1.bf16.msra.mxu0 0
    %1358 = vmatprep.subr.bf16.mxu0 0
    %1359 = vmatpush1.bf16.msra.mxu0 0
    %1360 = vmatprep.subr.bf16.mxu0 0
    %1361 = vmatpush1.bf16.msra.mxu0 0
    %1362 = vmatprep.subr.bf16.mxu0 0
    %1363 = vmatpush1.bf16.msra.mxu0 0
    %1364 = vmatprep.subr.bf16.mxu0 0
    %1365 = vmatpush1.bf16.msra.mxu0 0
    %1366 = vmatprep.subr.bf16.mxu0 0
    %1367 = vmatpush1.bf16.msra.mxu0 %v1352
    %1368 = vmatprep.subr.bf16.mxu0 0
    %1369 = vmatpush1.bf16.msra.mxu0 %v1343
    %1370 = vmatprep.subr.bf16.mxu0 0
    %1371 = vmatpush2.bf16.msra.mxu0 0
    %1372 = vmatprep.subr.bf16.mxu0 0
    %1373 = vmatpush2.bf16.msra.mxu0 0
    %1374 = vmatprep.subr.bf16.mxu0 0
    %1375 = vmatpush2.bf16.msra.mxu0 0
    %1376 = vmatprep.subr.bf16.mxu0 0
    %1377 = vmatpush2.bf16.msra.mxu0 0
    %1378 = vmatprep.subr.bf16.mxu0 0
    %1379 = vmatpush2.bf16.msra.mxu0 0
    %1380 = vmatprep.subr.bf16.mxu0 0
    %1381 = vmatpush2.bf16.msra.mxu0 0
    %1382 = vmatprep.subr.bf16.mxu0 0
    %1383 = vmatpush2.bf16.msra.mxu0 0
    %1384 = vmatprep.subr.bf16.mxu0 0
    %1385 = vmatpush2.bf16.msra.mxu0 0
    %1386 = vmatprep.mubr.bf16.mxu0 0
    %1387 = vmatmul.mubr.bf16.gmra.mxu0 %v1346
    %v1388 = vpop.f32.mrf.mxu0
    %v1389 = vadd.f32 0.0, %v1388
    %v1390 = vpop.f32.mrf.mxu0
    %v1391 = vpop.f32.mrf.mxu0
    %v1392 = vadd.f32 0.0, %v1391
    %v1393 = vpop.f32.mrf.mxu0
    %1394 = vmatprep.mubr.bf16.mxu0 0
    %1395 = vmatmul.mubr.bf16.gmra.mxu0 %v1349
    %v1396 = vpop.f32.mrf.mxu0
    %v1397 = vadd.f32 0.0, %v1396
    %v1398 = vpop.f32.mrf.mxu0
    %v1399 = vpop.f32.mrf.mxu0
    %v1400 = vpop.f32.mrf.mxu0
    %1401 = vdwg.mxu0
    %1402 = vst.msk [vmem:[#allocation2] sm:$0xff] %vm565, %v1389
    %1403 = vst.msk [vmem:[#allocation2 + $0x8] sm:$0xff] %vm565, %v1392
    %1404 = vst.msk [vmem:[#allocation2 + $0x10] sm:$0xff] %vm565, %v1397
    %1407 = vrot.lane.b32.xlu0 %v1343, 112
    %v1408 = vpop.permute.xlu0 %1407
    %1409 = vrot.lane.b32.xlu0 %v1344, 112
    %v1410 = vpop.permute.xlu0 %1409
    %v1413 = vsel %vm365, %v1337, 0
    %v1416 = vsel %vm365, %v1338, 0
    %v1419 = vsel %vm80, %v1410, 0
    %1421 = vmatprep.subr.bf16.mxu0 0
    %1422 = vmatpush1.bf16.msra.mxu0 0
    %1423 = vmatprep.subr.bf16.mxu0 0
    %1424 = vmatpush1.bf16.msra.mxu0 0
    %1425 = vmatprep.subr.bf16.mxu0 0
    %1426 = vmatpush1.bf16.msra.mxu0 0
    %1427 = vmatprep.subr.bf16.mxu0 0
    %1428 = vmatpush1.bf16.msra.mxu0 0
    %1429 = vmatprep.subr.bf16.mxu0 0
    %1430 = vmatpush1.bf16.msra.mxu0 0
    %1431 = vmatprep.subr.bf16.mxu0 0
    %1432 = vmatpush1.bf16.msra.mxu0 0
    %1433 = vmatprep.subr.bf16.mxu0 0
    %1434 = vmatpush1.bf16.msra.mxu0 %v1419
    %1435 = vmatprep.subr.bf16.mxu0 0
    %1436 = vmatpush1.bf16.msra.mxu0 %v1408
    %1437 = vmatprep.subr.bf16.mxu0 0
    %1438 = vmatpush2.bf16.msra.mxu0 0
    %1439 = vmatprep.subr.bf16.mxu0 0
    %1440 = vmatpush2.bf16.msra.mxu0 0
    %1441 = vmatprep.subr.bf16.mxu0 0
    %1442 = vmatpush2.bf16.msra.mxu0 0
    %1443 = vmatprep.subr.bf16.mxu0 0
    %1444 = vmatpush2.bf16.msra.mxu0 0
    %1445 = vmatprep.subr.bf16.mxu0 0
    %1446 = vmatpush2.bf16.msra.mxu0 0
    %1447 = vmatprep.subr.bf16.mxu0 0
    %1448 = vmatpush2.bf16.msra.mxu0 0
    %1449 = vmatprep.subr.bf16.mxu0 0
    %1450 = vmatpush2.bf16.msra.mxu0 0
    %1451 = vmatprep.subr.bf16.mxu0 0
    %1452 = vmatpush2.bf16.msra.mxu0 0
    %1453 = vmatprep.mubr.bf16.mxu0 0
    %1454 = vmatmul.mubr.bf16.gmra.mxu0 %v1413
    %v1455 = vpop.f32.mrf.mxu0
    %v1456 = vadd.f32 0.0, %v1455
    %v1457 = vpop.f32.mrf.mxu0
    %v1458 = vpop.f32.mrf.mxu0
    %v1459 = vadd.f32 0.0, %v1458
    %v1460 = vpop.f32.mrf.mxu0
    %1461 = vmatprep.mubr.bf16.mxu0 0
    %1462 = vmatmul.mubr.bf16.gmra.mxu0 %v1416
    %v1463 = vpop.f32.mrf.mxu0
    %v1464 = vadd.f32 0.0, %v1463
    %v1465 = vpop.f32.mrf.mxu0
    %v1466 = vpop.f32.mrf.mxu0
    %v1467 = vpop.f32.mrf.mxu0
    %1468 = vdwg.mxu0
    %1472 = vrot.lane.b32.xlu0 %v1456, 16
    %v1473 = vpop.permute.xlu0 %1472
    %1474 = vrot.lane.b32.xlu0 %v1459, 16
    %v1475 = vpop.permute.xlu0 %1474
    %1476 = vrot.lane.b32.xlu0 %v1464, 16
    %v1477 = vpop.permute.xlu0 %1476
    %1481 = vst.msk [vmem:[#allocation2] sm:$0xff] %vm645, %v1473
    %1482 = vst.msk [vmem:[#allocation2 + $0x8] sm:$0xff] %vm645, %v1475
    %1483 = vst.msk [vmem:[#allocation2 + $0x10] sm:$0xff] %vm645, %v1477
    %1484 = vrot.lane.b32.xlu0 %v1343, 96
    %v1485 = vpop.permute.xlu0 %1484
    %1486 = vrot.lane.b32.xlu0 %v1344, 96
    %v1487 = vpop.permute.xlu0 %1486
    %v1490 = vsel %vm365, %v1339, 0
    %v1493 = vsel %vm365, %v1340, 0
    %v1496 = vsel %vm80, %v1487, 0
    %1498 = vmatprep.subr.bf16.mxu0 0
    %1499 = vmatpush1.bf16.msra.mxu0 0
    %1500 = vmatprep.subr.bf16.mxu0 0
    %1501 = vmatpush1.bf16.msra.mxu0 0
    %1502 = vmatprep.subr.bf16.mxu0 0
    %1503 = vmatpush1.bf16.msra.mxu0 0
    %1504 = vmatprep.subr.bf16.mxu0 0
    %1505 = vmatpush1.bf16.msra.mxu0 0
    %1506 = vmatprep.subr.bf16.mxu0 0
    %1507 = vmatpush1.bf16.msra.mxu0 0
    %1508 = vmatprep.subr.bf16.mxu0 0
    %1509 = vmatpush1.bf16.msra.mxu0 0
    %1510 = vmatprep.subr.bf16.mxu0 0
    %1511 = vmatpush1.bf16.msra.mxu0 %v1496
    %1512 = vmatprep.subr.bf16.mxu0 0
    %1513 = vmatpush1.bf16.msra.mxu0 %v1485
    %1514 = vmatprep.subr.bf16.mxu0 0
    %1515 = vmatpush2.bf16.msra.mxu0 0
    %1516 = vmatprep.subr.bf16.mxu0 0
    %1517 = vmatpush2.bf16.msra.mxu0 0
    %1518 = vmatprep.subr.bf16.mxu0 0
    %1519 = vmatpush2.bf16.msra.mxu0 0
    %1520 = vmatprep.subr.bf16.mxu0 0
    %1521 = vmatpush2.bf16.msra.mxu0 0
    %1522 = vmatprep.subr.bf16.mxu0 0
    %1523 = vmatpush2.bf16.msra.mxu0 0
    %1524 = vmatprep.subr.bf16.mxu0 0
    %1525 = vmatpush2.bf16.msra.mxu0 0
    %1526 = vmatprep.subr.bf16.mxu0 0
    %1527 = vmatpush2.bf16.msra.mxu0 0
    %1528 = vmatprep.subr.bf16.mxu0 0
    %1529 = vmatpush2.bf16.msra.mxu0 0
    %1530 = vmatprep.mubr.bf16.mxu0 0
    %1531 = vmatmul.mubr.bf16.gmra.mxu0 %v1490
    %v1532 = vpop.f32.mrf.mxu0
    %v1533 = vadd.f32 0.0, %v1532
    %v1534 = vpop.f32.mrf.mxu0
    %v1535 = vpop.f32.mrf.mxu0
    %v1536 = vadd.f32 0.0, %v1535
    %v1537 = vpop.f32.mrf.mxu0
    %1538 = vmatprep.mubr.bf16.mxu0 0
    %1539 = vmatmul.mubr.bf16.gmra.mxu0 %v1493
    %v1540 = vpop.f32.mrf.mxu0
    %v1541 = vadd.f32 0.0, %v1540
    %v1542 = vpop.f32.mrf.mxu0
    %v1543 = vpop.f32.mrf.mxu0
    %v1544 = vpop.f32.mrf.mxu0
    %1545 = vdwg.mxu0
    %1549 = vrot.lane.b32.xlu0 %v1533, 32
    %v1550 = vpop.permute.xlu0 %1549
    %1551 = vrot.lane.b32.xlu0 %v1536, 32
    %v1552 = vpop.permute.xlu0 %1551
    %1553 = vrot.lane.b32.xlu0 %v1541, 32
    %v1554 = vpop.permute.xlu0 %1553
    %1558 = vst.msk [vmem:[#allocation2] sm:$0xff] %vm723, %v1550
    %1559 = vst.msk [vmem:[#allocation2 + $0x8] sm:$0xff] %vm723, %v1552
    %1560 = vst.msk [vmem:[#allocation2 + $0x10] sm:$0xff] %vm723, %v1554
    %1561 = vrot.lane.b32.xlu0 %v1343, 80
    %v1562 = vpop.permute.xlu0 %1561
    %1563 = vrot.lane.b32.xlu0 %v1344, 80
    %v1564 = vpop.permute.xlu0 %1563
    %v1567 = vsel %vm365, %v1341, 0
    %v1570 = vsel %vm365, %v1342, 0
    %v1573 = vsel %vm80, %v1564, 0
    %1575 = vmatprep.subr.bf16.mxu0 0
    %1576 = vmatpush1.bf16.msra.mxu0 0
    %1577 = vmatprep.subr.bf16.mxu0 0
    %1578 = vmatpush1.bf16.msra.mxu0 0
    %1579 = vmatprep.subr.bf16.mxu0 0
    %1580 = vmatpush1.bf16.msra.mxu0 0
    %1581 = vmatprep.subr.bf16.mxu0 0
    %1582 = vmatpush1.bf16.msra.mxu0 0
    %1583 = vmatprep.subr.bf16.mxu0 0
    %1584 = vmatpush1.bf16.msra.mxu0 0
    %1585 = vmatprep.subr.bf16.mxu0 0
    %1586 = vmatpush1.bf16.msra.mxu0 0
    %1587 = vmatprep.subr.bf16.mxu0 0
    %1588 = vmatpush1.bf16.msra.mxu0 %v1573
    %1589 = vmatprep.subr.bf16.mxu0 0
    %1590 = vmatpush1.bf16.msra.mxu0 %v1562
    %1591 = vmatprep.subr.bf16.mxu0 0
    %1592 = vmatpush2.bf16.msra.mxu0 0
    %1593 = vmatprep.subr.bf16.mxu0 0
    %1594 = vmatpush2.bf16.msra.mxu0 0
    %1595 = vmatprep.subr.bf16.mxu0 0
    %1596 = vmatpush2.bf16.msra.mxu0 0
    %1597 = vmatprep.subr.bf16.mxu0 0
    %1598 = vmatpush2.bf16.msra.mxu0 0
    %1599 = vmatprep.subr.bf16.mxu0 0
    %1600 = vmatpush2.bf16.msra.mxu0 0
    %1601 = vmatprep.subr.bf16.mxu0 0
    %1602 = vmatpush2.bf16.msra.mxu0 0
    %1603 = vmatprep.subr.bf16.mxu0 0
    %1604 = vmatpush2.bf16.msra.mxu0 0
    %1605 = vmatprep.subr.bf16.mxu0 0
    %1606 = vmatpush2.bf16.msra.mxu0 0
    %1607 = vmatprep.mubr.bf16.mxu0 0
    %1608 = vmatmul.mubr.bf16.gmra.mxu0 %v1567
    %v1609 = vpop.f32.mrf.mxu0
    %v1610 = vadd.f32 0.0, %v1609
    %v1611 = vpop.f32.mrf.mxu0
    %v1612 = vpop.f32.mrf.mxu0
    %v1613 = vadd.f32 0.0, %v1612
    %v1614 = vpop.f32.mrf.mxu0
    %1615 = vmatprep.mubr.bf16.mxu0 0
    %1616 = vmatmul.mubr.bf16.gmra.mxu0 %v1570
    %v1617 = vpop.f32.mrf.mxu0
    %v1618 = vadd.f32 0.0, %v1617
    %v1619 = vpop.f32.mrf.mxu0
    %v1620 = vpop.f32.mrf.mxu0
    %v1621 = vpop.f32.mrf.mxu0
    %1622 = vdwg.mxu0
    %1626 = vrot.lane.b32.xlu0 %v1610, 48
    %v1627 = vpop.permute.xlu0 %1626
    %1628 = vrot.lane.b32.xlu0 %v1613, 48
    %v1629 = vpop.permute.xlu0 %1628
    %1630 = vrot.lane.b32.xlu0 %v1618, 48
    %v1631 = vpop.permute.xlu0 %1630
    %1635 = vst.msk [vmem:[#allocation2] sm:$0xff] %vm801, %v1627
    %1636 = vst.msk [vmem:[#allocation2 + $0x8] sm:$0xff] %vm801, %v1629
    %1637 = vst.msk [vmem:[#allocation2 + $0x10] sm:$0xff] %vm801, %v1631
    %v1638 = vld [vmem:[#allocation2] sm:$0xff]
    %v1639 = vld [vmem:[#allocation2 + $0x8] sm:$0xff]
    %v1640 = vld [vmem:[#allocation2 + $0x10] sm:$0xff]
    %v1641 = vld [vmem:[%s8] sm:$0x1]
    %v1643 = vlaneseq
    %v1644 = vshrl.u32 %v1643, 7
    %v1645 = vsub.s32 0, %v1644
    %v1646 = vrot.slane %v1641, %v1645
    %v1648 = vadd.f32 %v1638, %v1646
    %v1649 = vadd.f32 %v1639, %v1646
    %v1650 = vadd.f32 %v1640, %v1646
    %v1651 = vmax.f32 %v1648, 0.0
    %v1652 = vmax.f32 %v1649, 0.0
    %v1653 = vmax.f32 %v1650, 0.0
    %v1654 = vld [vmem:[%s9] sm:$0x3]
    %v1655 = vlaneseq
    %v1656 = vshrl.u32 %v1655, 7
    %v1657 = vsub.s32 0, %v1656
    %v1658 = vrot.slane %v1654, %v1657
    %1660 = vbcast.lane.b32.xlu0 %v1658, 256
    %v1661 = vpop.permute.xlu0 %1660
    %s1663 = sor.u32 256, 8
    %1664 = vbcast.lane.b32.xlu0 %v1658, %s1663
    %v1665 = vpop.permute.xlu0 %1664
    %s1667 = sor.u32 256, 16
    %1668 = vbcast.lane.b32.xlu0 %v1658, %s1667
    %v1669 = vpop.permute.xlu0 %1668
    %v1670 = vlaneseq
    %v1671 = vshrl.u32 %v1670, 7
    %v1672 = vsub.s32 1, %v1671
    %v1673 = vrot.slane %v1654, %v1672
    %1675 = vbcast.lane.b32.xlu0 %v1673, 256
    %v1676 = vpop.permute.xlu0 %1675
    %s1678 = sor.u32 256, 8
    %1679 = vbcast.lane.b32.xlu0 %v1673, %s1678
    %v1680 = vpop.permute.xlu0 %1679
    %s1682 = sor.u32 256, 16
    %1683 = vbcast.lane.b32.xlu0 %v1673, %s1682
    %v1684 = vpop.permute.xlu0 %1683
    %vm1685 = vcmp.gt.f32.partialorder %v1661, 0.0
    %vm1686 = vcmp.gt.f32.partialorder %v1665, 0.0
    %vm1687 = vcmp.gt.f32.partialorder %v1669, 0.0
    %vm1688 = vcmp.gt.f32.partialorder %v1676, 0.0
    %vm1689 = vcmp.gt.f32.partialorder %v1680, 0.0
    %vm1690 = vcmp.gt.f32.partialorder %v1684, 0.0
    %v1691 = vsel %vm1685, 1, 0
    %v1692 = vsel %vm1686, 1, 0
    %v1693 = vsel %vm1687, 1, 0
    %v1694 = vsel %vm1688, 1, 0
    %v1695 = vsel %vm1689, 1, 0
    %v1696 = vsel %vm1690, 1, 0
    %vm1697 = vcmp.eq.s32.totalorder %v1691, 1
    %vm1698 = vcmp.eq.s32.totalorder %v1692, 1
    %vm1699 = vcmp.eq.s32.totalorder %v1693, 1
    %vm1700 = vcmp.eq.s32.totalorder %v1694, 1
    %vm1701 = vcmp.eq.s32.totalorder %v1695, 1
    %vm1702 = vcmp.eq.s32.totalorder %v1696, 1
    %v1703 = vsel %vm1697, %v1651, -1e+30
    %v1704 = vsel %vm1698, %v1652, -1e+30
    %v1705 = vsel %vm1699, %v1653, -1e+30
    %v1706 = vsel %vm1700, %v1651, -1e+30
    %v1707 = vsel %vm1701, %v1652, -1e+30
    %v1708 = vsel %vm1702, %v1653, -1e+30
    %v1709 = vsel %vm823, %v1703, -inf
    %v1710 = vsel %vm823, %v1704, -inf
    %v1711 = vsel %vm823, %v1705, -inf
    %v1712 = vmax.f32 %v1709, %v1711
    %v1713 = vmax.f32 %v1712, %v1710
    %v1714 = vrot.slane %v1713, 4
    %v1715 = vmax.f32 %v1713, %v1714
    %v1716 = vrot.slane %v1715, 2
    %v1717 = vmax.f32 %v1715, %v1716
    %v1718 = vrot.slane %v1717, 1
    %v1719 = vmax.f32 %v1717, %v1718
    %v1720 = vsel %vm823, %v1706, -inf
    %v1721 = vsel %vm823, %v1707, -inf
    %v1722 = vsel %vm823, %v1708, -inf
    %v1723 = vmax.f32 %v1720, %v1722
    %v1724 = vmax.f32 %v1723, %v1721
    %v1725 = vrot.slane %v1724, 4
    %v1726 = vmax.f32 %v1724, %v1725
    %v1727 = vrot.slane %v1726, 2
    %v1728 = vmax.f32 %v1726, %v1727
    %v1729 = vrot.slane %v1728, 1
    %v1730 = vmax.f32 %v1728, %v1729
    %v1731 = vld [vmem:[%s10] sm:$0xff]
    %v1732 = vld [vmem:[%s10 + $0x8] sm:$0xff]
    %v1733 = vld [vmem:[%s10 + $0x10] sm:$0xff]
    %v1734 = vld [vmem:[%s10 + $0x18] sm:$0xff]
    %v1735 = vld [vmem:[%s10 + $0x20] sm:$0xff]
    %v1736 = vld [vmem:[%s10 + $0x28] sm:$0xff]
    %v1737 = vld [vmem:[%s10 + $0x30] sm:$0xff]
    %v1738 = vld [vmem:[%s10 + $0x38] sm:$0xff]
    %v1739 = vld [vmem:[%s11] sm:$0x1]
    %v1741 = vlaneseq
    %v1742 = vshrl.u32 %v1741, 7
    %v1743 = vsub.s32 0, %v1742
    %v1744 = vrot.slane %v1739, %v1743
    %vm1748 = vcmask 1041409
    %v1749 = vsel %vm1748, %v1730, %v1719
    %v1750 = vsel %vm823, %v1749, 0
    %1752 = vmatprep.subr.mxu0 0.0
    %1753 = vmatpush1.msra.mxu0 0.0
    %1754 = vmatprep.subr.mxu0 0.0
    %1755 = vmatpush1.msra.mxu0 0.0
    %1756 = vmatprep.subr.mxu0 0.0
    %1757 = vmatpush1.msra.mxu0 0.0
    %1758 = vmatprep.subr.mxu0 0.0
    %1759 = vmatpush1.msra.mxu0 0.0
    %1760 = vmatprep.subr.mxu0 0.0
    %1761 = vmatpush1.msra.mxu0 0.0
    %1762 = vmatprep.subr.mxu0 0.0
    %1763 = vmatpush1.msra.mxu0 0.0
    %1764 = vmatprep.subr.mxu0 0.0
    %1765 = vmatpush1.msra.mxu0 0.0
    %1766 = vmatprep.subr.mxu0 0.0
    %1767 = vmatpush1.msra.mxu0 0.0
    %1768 = vmatprep.subr.mxu0 0.0
    %1769 = vmatpush1.msra.mxu0 %v1738
    %1770 = vmatprep.subr.mxu0 0.0
    %1771 = vmatpush1.msra.mxu0 %v1737
    %1772 = vmatprep.subr.mxu0 0.0
    %1773 = vmatpush1.msra.mxu0 %v1736
    %1774 = vmatprep.subr.mxu0 0.0
    %1775 = vmatpush1.msra.mxu0 %v1735
    %1776 = vmatprep.subr.mxu0 0.0
    %1777 = vmatpush1.msra.mxu0 %v1734
    %1778 = vmatprep.subr.mxu0 0.0
    %1779 = vmatpush1.msra.mxu0 %v1733
    %1780 = vmatprep.subr.mxu0 0.0
    %1781 = vmatpush1.msra.mxu0 %v1732
    %1782 = vmatprep.subr.mxu0 0.0
    %1783 = vmatpush1.msra.mxu0 %v1731
    %1784 = vmatprep.subr.mxu0 0.0
    %1785 = vmatpush2.msra.mxu0 0.0
    %1786 = vmatprep.subr.mxu0 0.0
    %1787 = vmatpush2.msra.mxu0 0.0
    %1788 = vmatprep.subr.mxu0 0.0
    %1789 = vmatpush2.msra.mxu0 0.0
    %1790 = vmatprep.subr.mxu0 0.0
    %1791 = vmatpush2.msra.mxu0 0.0
    %1792 = vmatprep.subr.mxu0 0.0
    %1793 = vmatpush2.msra.mxu0 0.0
    %1794 = vmatprep.subr.mxu0 0.0
    %1795 = vmatpush2.msra.mxu0 0.0
    %1796 = vmatprep.subr.mxu0 0.0
    %1797 = vmatpush2.msra.mxu0 0.0
    %1798 = vmatprep.subr.mxu0 0.0
    %1799 = vmatpush2.msra.mxu0 0.0
    %1800 = vmatprep.subr.mxu0 0.0
    %1801 = vmatpush2.msra.mxu0 0.0
    %1802 = vmatprep.subr.mxu0 0.0
    %1803 = vmatpush2.msra.mxu0 0.0
    %1804 = vmatprep.subr.mxu0 0.0
    %1805 = vmatpush2.msra.mxu0 0.0
    %1806 = vmatprep.subr.mxu0 0.0
    %1807 = vmatpush2.msra.mxu0 0.0
    %1808 = vmatprep.subr.mxu0 0.0
    %1809 = vmatpush2.msra.mxu0 0.0
    %1810 = vmatprep.subr.mxu0 0.0
    %1811 = vmatpush2.msra.mxu0 0.0
    %1812 = vmatprep.subr.mxu0 0.0
    %1813 = vmatpush2.msra.mxu0 0.0
    %1814 = vmatprep.subr.mxu0 0.0
    %1815 = vmatpush2.msra.mxu0 0.0
    %1816 = vmatprep.mubr.f32.mxu0 0.0
    %1817 = vmatmul.mubr.f32.gmra.mxu0 %v1750
    %v1818 = vpop.f32.mrf.mxu0
    %v1819 = vadd.f32 %v1744, %v1818
    %v1820 = vpop.f32.mrf.mxu0
    %1821 = vdwg.mxu0
    %v1822 = vld [vmem:[%s12] sm:$0x1]
    %v1823 = vld [vmem:[%s13] sm:$0x1]
    %vm1824 = vcmask 254976
    %v1825 = vsel %vm1824, %v1819, 0.0
    %1826 = vadd.xlane.f32.xlu0 %v1825
    %v1827 = vpop.xlane.xlu0 %1826
    %v1828 = vrcp.pop 32.0
    %v1829 = vmul.f32 %v1827, %v1828
    %v1830 = vsub.f32 %v1819, %v1829
    %v1831 = vmul.f32 %v1830, %v1830
    %v1832 = vsel %vm1824, %v1831, 0.0
    %1833 = vadd.xlane.f32.xlu0 %v1832
    %v1834 = vpop.xlane.xlu0 %1833
    %v1835 = vmul.f32 %v1834, %v1828
    %v1836 = vadd.f32 %v1835, 1e-05
    %v1837 = vrsqrt.pop %v1836
    %v1838 = vmul.f32 %v1830, %v1837
    %v1840 = vlaneseq
    %v1841 = vshrl.u32 %v1840, 7
    %v1842 = vsub.s32 0, %v1841
    %v1843 = vrot.slane %v1822, %v1842
    %v1845 = vmul.f32 %v1838, %v1843
    %v1847 = vlaneseq
    %v1848 = vshrl.u32 %v1847, 7
    %v1849 = vsub.s32 0, %v1848
    %v1850 = vrot.slane %v1823, %v1849
    %v1852 = vadd.f32 %v1845, %v1850
    %v1853 = vmax.f32 %v1852, 0.0
    %v1854 = vld [vmem:[%s14] sm:$0xff]
    %v1855 = vld [vmem:[%s14 + $0x8] sm:$0xff]
    %v1856 = vld [vmem:[%s14 + $0x10] sm:$0xff]
    %v1857 = vld [vmem:[%s14 + $0x18] sm:$0xff]
    %v1858 = vld [vmem:[%s15] sm:$0x1]
    %v1860 = vlaneseq
    %v1861 = vshrl.u32 %v1860, 7
    %v1862 = vsub.s32 0, %v1861
    %v1863 = vrot.slane %v1858, %v1862
    %vm1865 = vcmask 261120
    %v1867 = vsel %vm1865, %v1853, 0
    %1869 = vmatprep.subr.mxu0 0.0
    %1870 = vmatpush1.msra.mxu0 0.0
    %1871 = vmatprep.subr.mxu0 0.0
    %1872 = vmatpush1.msra.mxu0 0.0
    %1873 = vmatprep.subr.mxu0 0.0
    %1874 = vmatpush1.msra.mxu0 0.0
    %1875 = vmatprep.subr.mxu0 0.0
    %1876 = vmatpush1.msra.mxu0 0.0
    %1877 = vmatprep.subr.mxu0 0.0
    %1878 = vmatpush1.msra.mxu0 0.0
    %1879 = vmatprep.subr.mxu0 0.0
    %1880 = vmatpush1.msra.mxu0 0.0
    %1881 = vmatprep.subr.mxu0 0.0
    %1882 = vmatpush1.msra.mxu0 0.0
    %1883 = vmatprep.subr.mxu0 0.0
    %1884 = vmatpush1.msra.mxu0 0.0
    %1885 = vmatprep.subr.mxu0 0.0
    %1886 = vmatpush1.msra.mxu0 0.0
    %1887 = vmatprep.subr.mxu0 0.0
    %1888 = vmatpush1.msra.mxu0 0.0
    %1889 = vmatprep.subr.mxu0 0.0
    %1890 = vmatpush1.msra.mxu0 0.0
    %1891 = vmatprep.subr.mxu0 0.0
    %1892 = vmatpush1.msra.mxu0 0.0
    %1893 = vmatprep.subr.mxu0 0.0
    %1894 = vmatpush1.msra.mxu0 %v1857
    %1895 = vmatprep.subr.mxu0 0.0
    %1896 = vmatpush1.msra.mxu0 %v1856
    %1897 = vmatprep.subr.mxu0 0.0
    %1898 = vmatpush1.msra.mxu0 %v1855
    %1899 = vmatprep.subr.mxu0 0.0
    %1900 = vmatpush1.msra.mxu0 %v1854
    %1901 = vmatprep.subr.mxu0 0.0
    %1902 = vmatpush2.msra.mxu0 0.0
    %1903 = vmatprep.subr.mxu0 0.0
    %1904 = vmatpush2.msra.mxu0 0.0
    %1905 = vmatprep.subr.mxu0 0.0
    %1906 = vmatpush2.msra.mxu0 0.0
    %1907 = vmatprep.subr.mxu0 0.0
    %1908 = vmatpush2.msra.mxu0 0.0
    %1909 = vmatprep.subr.mxu0 0.0
    %1910 = vmatpush2.msra.mxu0 0.0
    %1911 = vmatprep.subr.mxu0 0.0
    %1912 = vmatpush2.msra.mxu0 0.0
    %1913 = vmatprep.subr.mxu0 0.0
    %1914 = vmatpush2.msra.mxu0 0.0
    %1915 = vmatprep.subr.mxu0 0.0
    %1916 = vmatpush2.msra.mxu0 0.0
    %1917 = vmatprep.subr.mxu0 0.0
    %1918 = vmatpush2.msra.mxu0 0.0
    %1919 = vmatprep.subr.mxu0 0.0
    %1920 = vmatpush2.msra.mxu0 0.0
    %1921 = vmatprep.subr.mxu0 0.0
    %1922 = vmatpush2.msra.mxu0 0.0
    %1923 = vmatprep.subr.mxu0 0.0
    %1924 = vmatpush2.msra.mxu0 0.0
    %1925 = vmatprep.subr.mxu0 0.0
    %1926 = vmatpush2.msra.mxu0 0.0
    %1927 = vmatprep.subr.mxu0 0.0
    %1928 = vmatpush2.msra.mxu0 0.0
    %1929 = vmatprep.subr.mxu0 0.0
    %1930 = vmatpush2.msra.mxu0 0.0
    %1931 = vmatprep.subr.mxu0 0.0
    %1932 = vmatpush2.msra.mxu0 0.0
    %1933 = vmatprep.mubr.f32.mxu0 0.0
    %1934 = vmatmul.mubr.f32.gmra.mxu0 %v1867
    %v1935 = vpop.f32.mrf.mxu0
    %v1936 = vadd.f32 %v1863, %v1935
    %v1937 = vpop.f32.mrf.mxu0
    %1938 = vdwg.mxu0
    %vm1939 = vcmask 9216
    %v1940 = vsel %vm1939, %v1936, -inf
    %1941 = vmax.xlane.f32.xlu0 %v1940
    %v1942 = vpop.xlane.xlu0 %1941
    %v1943 = vsub.f32 %v1936, %v1942
    %v1944 = vmul.f32 %v1943, 1.442695
    %v1945 = vpow.pop %v1944
    %v1946 = vsel %vm1939, %v1945, 0.0
    %1947 = vadd.xlane.f32.xlu0 %v1946
    %v1948 = vpop.xlane.xlu0 %1947
    %v1949 = vlog2.pop %v1948
    %v1950 = vmul.f32 %v1949, 0.6931472
    %v1951 = vadd.f32 %v1942, %v1950
    %v1952 = vsub.f32 %v1936, %v1951
    %1953 = vst.msk [vmem:[#allocation6] sm:$0x3] %vm1939, %v1952
    // Predicated region
    $region70: #{tpu_custom_call.1} parent=1 // pred_check
      _
    $region71: #{tpu_custom_call.1} parent=1 // pred_check_branch
      %1955 = sbr.rel (0) target = $region73
    $region72: #{tpu_custom_call.1} parent=1 // pred_region
      %s1957 = ssub.s32 32, 32
      %1958 = vsyncadd [#allocation5], %s1957
      %s1960 = sshll.u32 [#allocation6], 4
      %s1961 = int_to_ptr.vmem [resolvable:$true] %s1960
      %1963 = dma.vmem_to_hbm [thread:$0]  %s1961, 32, %s16, [#allocation5]
    $region73: #{tpu_custom_call.1} parent=1 // pred_fallthru
      _
    // Predicated region
    $region74: #{tpu_custom_call.1} parent=1 // pred_check
      _
    $region75: #{tpu_custom_call.1} parent=1 // pred_check_branch
      %1965 = sbr.rel (0) target = $region77
    $region76: #{tpu_custom_call.1} parent=1 // pred_region
      %1966 = dma.done [#allocation5], 32
    $region77: #{tpu_custom_call.1} parent=1 // pred_fallthru
      _
    %1967 = vsyncpa [#allocation4], 1
    %1968 = vsyncpa [#allocation5], 1

</llo_original>
